<compile_context>
chip_gen: v5e
topology: v5e:2x2
jax: 0.10.0
libtpu: 0.0.40
codegen_flags: <defaults>
</compile_context>

<pallas_src>
import math
import jax
import jax.numpy as jnp
from jax.experimental import pallas as pl
from jax.experimental.pallas import tpu as pltpu  # noqa: F401  (kept for TPU-specific tuning hooks)

D_MODEL = 32
D_FF = 64
N_HEAD = 4
D_HEAD = D_MODEL // N_HEAD
LN_EPS = 1e-5


# ----------------------------- wrapper-side (host) layout helpers -----------------------------
def _head_block_diag(n_kv_total, d_model, n_head):
    """0/1 matrix (n_head*n_kv_total, d_model); row block h keeps only head-h feature columns."""
    d_head = d_model // n_head
    r = jnp.arange(n_head * n_kv_total)[:, None] // n_kv_total
    c = jnp.arange(d_model)[None, :] // d_head
    return (r == c).astype(jnp.float32)


def _fold_mask(mask, n_head):
    """(B, T, S) additive mask -> (B*T, n_head*B*S) wide mask matching the folded score layout.

    Score column index = h*(B*S) + b'*S + s.  Cross-batch (b' != b_row) entries get -1e9.
    """
    B, T, S = mask.shape
    big = jnp.full((B * T, B * S), -1e9, jnp.float32)
    for bi in range(B):
        big = big.at[bi * T:(bi + 1) * T, bi * S:(bi + 1) * S].set(mask[bi])
    return jnp.tile(big, (1, n_head))


# ------------------------------------------ kernel ------------------------------------------
def decoder_layer_kernel(x_ref, enc_ref, mtrg_ref, msrc_ref,
                         bd2s_ref, bdbfs_ref, bd2c_ref, bdbfc_ref,
                         wqkv_s_ref, bqkv_s_ref, wkv_c_ref, bkv_c_ref,
                         w3_ref, b3_ref, ln_ref,
                         wf1_ref, bf1_ref, wf2_ref, bf2_ref,
                         out_ref):
    f32, bf16 = jnp.float32, jnp.bfloat16

    x = x_ref[...]      # (B*T, D) f32, batch folded onto rows
    enc = enc_ref[...]  # (B*S, D) f32

    def layer_norm(v, idx):
        g = ln_ref[pl.ds(2 * idx, 1), :]        # (1, D)
        b = ln_ref[pl.ds(2 * idx + 1, 1), :]    # (1, D)
        mean = jnp.mean(v, axis=-1, keepdims=True)
        cent = v - mean
        var = jnp.mean(cent * cent, axis=-1, keepdims=True)
        return cent * jax.lax.rsqrt(var + LN_EPS) * g + b

    def mha(q, kv, mask_wide, bd2, bd_bf, o_idx):
        """All heads and both batches in one pass.

        q         : (B*T, D)              f32
        kv        : (B*n_kv, 2D)          f32, lanes = [K | V]
        mask_wide : (B*T, H*B*n_kv)       additive (incl. -1e9 cross-batch block)
        bd2       : (H*B*n_kv, 2D)        f32 0/1 head pattern, [bd | bd]
        bd_bf     : (H*B*n_kv, D)         bf16 head pattern (softmax denominator RHS)
        """
        # single replicate + single mask multiply + single bf16 cast (review item 5)
        kv_rep = jnp.concatenate([kv] * N_HEAD, axis=0)      # (H*B*n_kv, 2D) f32 sublane tile
        kv_bd = (kv_rep * bd2).astype(bf16)                  # mask in f32, cast once
        k_bd = kv_bd[:, 0:D_MODEL]                           # (H*B*n_kv, D) bf16
        v_bd = kv_bd[:, D_MODEL:2 * D_MODEL]                 # (H*B*n_kv, D) bf16
        rhs = jnp.concatenate([v_bd, bd_bf], axis=1)         # (H*B*n_kv, 2D): [V_bd | bd]

        q_bf = (q * (1.0 / math.sqrt(D_HEAD))).astype(bf16)  # fold in 1/sqrt(d_head)
        # scores[row, h*(B*n_kv) + b'*n_kv + s] = <q_h[row], k^{b'}_h[s]> / sqrt(dh)
        scores = jnp.einsum('td,nd->tn', q_bf, k_bd,
                            preferred_element_type=f32) + mask_wide
        m = jnp.max(scores, axis=-1, keepdims=True)          # per-row shift (cross-batch -> exp 0)
        p = jnp.exp(scores - m).astype(bf16)

        # fused numerator + denominator: one matmul, static lane split (review item 4)
        nd = jnp.dot(p, rhs, preferred_element_type=f32)     # (B*T, 2D) = [num | den]
        num = nd[:, 0:D_MODEL]
        den = jnp.maximum(nd[:, D_MODEL:2 * D_MODEL], 1e-30)  # underflow guard (robustness)
        attn = num * pl.reciprocal(den, approx=True)          # heads already concatenated

        w_o = w3_ref[o_idx]                                   # (D, D) bf16
        b_o = b3_ref[pl.ds(o_idx, 1), :]                      # (1, D) f32
        return jnp.dot(attn.astype(bf16), w_o, preferred_element_type=f32) + b_o

    # ---------------- self-attention sublayer ----------------
    qkv = jnp.dot(x.astype(bf16), wqkv_s_ref[...],
                  preferred_element_type=f32) + bqkv_s_ref[...]        # (B*T, 3D) fused projection
    q_s = qkv[:, 0:D_MODEL]
    kv_s = qkv[:, D_MODEL:3 * D_MODEL]                                 # already [K | V]
    attn1 = layer_norm(
        x + mha(q_s, kv_s, mtrg_ref[...], bd2s_ref[...], bdbfs_ref[...], 0), 0)   # pp1

    # ---------------- encoder-decoder cross-attention sublayer ----------------
    q_c = jnp.dot(attn1.astype(bf16), w3_ref[1],
                  preferred_element_type=f32) + b3_ref[pl.ds(1, 1), :]
    kv_c = jnp.dot(enc.astype(bf16), wkv_c_ref[...],
                   preferred_element_type=f32) + bkv_c_ref[...]        # (B*S, 2D) = [K | V]
    sub = layer_norm(
        attn1 + mha(q_c, kv_c, msrc_ref[...], bd2c_ref[...], bdbfc_ref[...], 2), 1)  # pp2

    # ---------------- position-wise feed-forward ----------------
    h1 = jnp.maximum(
        jnp.dot(sub.astype(bf16), wf1_ref[...], preferred_element_type=f32) + bf1_ref[...], 0.0)
    z = jnp.dot(h1.astype(bf16), wf2_ref[...], preferred_element_type=f32) + bf2_ref[...]
    out_ref[...] = layer_norm(sub + z, 2)                              # pp3


# ------------------------------------------ wrapper ------------------------------------------
def decoder_layer(emb, enc_hidden, mask_trg, mask_src, params):
    B, T, D = emb.shape
    S = enc_hidden.shape[1]
    w, b, lnp, wf1, bf1, wf2, bf2 = params
    H = N_HEAD
    bf16 = jnp.bfloat16

    # ---- fold batch onto the sublane (row) axis: one kernel invocation for the whole batch ----
    x2 = emb.reshape(B * T, D)
    enc2 = enc_hidden.reshape(B * S, D)

    # ---- fused projection weights (pure layout plumbing, done once) ----
    w_qkv_s = jnp.concatenate([w[0], w[1], w[2]], axis=1).astype(bf16)   # (D, 3D) fused self QKV
    b_qkv_s = jnp.concatenate([b[0], b[1], b[2]])[None, :]               # (1, 3D) f32
    w_kv_c = jnp.concatenate([w[5], w[6]], axis=1).astype(bf16)          # (D, 2D) fused cross KV
    b_kv_c = jnp.concatenate([b[5], b[6]])[None, :]                      # (1, 2D) f32
    w3 = jnp.stack([w[3], w[4], w[7]], axis=0).astype(bf16)              # [Wo_self, Wq_cross, Wo_cross]
    b3 = jnp.stack([b[3], b[4], b[7]], axis=0)                           # (3, D) f32
    wf1_b = wf1.astype(bf16)
    wf2_b = wf2.astype(bf16)

    # ---- block-diagonal head patterns, built ONCE in the wrapper (review item 2) ----
    bd_s = _head_block_diag(B * T, D, H)                 # (H*B*T, D) f32 0/1
    bd_c = _head_block_diag(B * S, D, H)                 # (H*B*S, D)
    bd2_s = jnp.concatenate([bd_s, bd_s], axis=1)        # (H*B*T, 2D) masks [K | V] at once
    bd2_c = jnp.concatenate([bd_c, bd_c], axis=1)
    bdbf_s = bd_s.astype(bf16)                           # denominator RHS
    bdbf_c = bd_c.astype(bf16)

    # ---- wide additive masks: per-head tiling + -1e9 cross-batch blocks (batch folding) ----
    mtrg_w = _fold_mask(mask_trg, H)   # (B*T, H*B*T)
    msrc_w = _fold_mask(mask_src, H)   # (B*T, H*B*S)

    # Single step, no grid: every array is tiny (<100 KB total) and fits VMEM on v5e/v6e/v7x; the
    # whole layer runs on one TensorCore which beats paying the ~600-cycle per-step overhead twice.
    out2 = pl.pallas_call(
        decoder_layer_kernel,
        out_shape=jax.ShapeDtypeStruct((B * T, D), jnp.float32),
    )(x2, enc2, mtrg_w, msrc_w,
      bd2_s, bdbf_s, bd2_c, bdbf_c,
      w_qkv_s, b_qkv_s, w_kv_c, b_kv_c, w3, b3, lnp,
      wf1_b, bf1, wf2_b, bf2)

    return out2.reshape(B, T, D)


# ---------------------- pure-JAX reference (float32, faithful to the module) ----------------------
def _layer_norm_ref(x, gamma, beta):
    mean = jnp.mean(x, axis=-1, keepdims=True)
    var = jnp.mean((x - mean) ** 2, axis=-1, keepdims=True)
    return (x - mean) * jax.lax.rsqrt(var + LN_EPS) * gamma + beta


def _ref_single(x, enc, mtrg, msrc, params):
    w, b, lnp, wf1, bf1, wf2, bf2 = params

    def linear(inp, idx):
        return inp @ w[idx] + b[idx][None, :]

    def mha_sdp(q_in, kv_in, mask, base):
        q, k, v = linear(q_in, base), linear(kv_in, base + 1), linear(kv_in, base + 2)
        scale = 1.0 / math.sqrt(D_HEAD)
        heads = []
        for h in range(N_HEAD):
            sl = slice(h * D_HEAD, (h + 1) * D_HEAD)
            s = q[:, sl] @ k[:, sl].T * scale + mask
            p = jax.nn.softmax(s, axis=-1)
            heads.append(p @ v[:, sl])
        return linear(jnp.concatenate(heads, axis=-1), base + 3)

    def ln(xv, idx):
        return _layer_norm_ref(xv, lnp[2 * idx][None, :], lnp[2 * idx + 1][None, :])

    attn1 = ln(x + mha_sdp(x, x, mtrg, 0), 0)
    sub = ln(attn1 + mha_sdp(attn1, enc, msrc, 4), 1)
    z = jnp.maximum(sub @ wf1 + bf1, 0.0) @ wf2 + bf2
    return ln(sub + z, 2)


def decoder_layer_ref(emb, enc, mtrg, msrc, params):
    return jax.vmap(lambda a, b_, c, d: _ref_single(a, b_, c, d, params))(emb, enc, mtrg, msrc)


# ------------------------------------------ main ------------------------------------------
if __name__ == "__main__":
    B, T, S = 2, 8, 8
    D, F = D_MODEL, D_FF

    key = jax.random.PRNGKey(0)
    ks = jax.random.split(key, 10)
    scale = 0.05

    # Parameters (deterministic synthetic init).
    w = jax.random.normal(ks[0], (8, D, D), jnp.float32) * scale          # qkvo x 2 attns
    b = jax.random.normal(ks[1], (8, D), jnp.float32) * scale
    gammas = 1.0 + 0.1 * jax.random.normal(ks[2], (3, D), jnp.float32)
    betas = 0.1 * jax.random.normal(ks[3], (3, D), jnp.float32)
    lnp = jnp.stack([gammas[0], betas[0], gammas[1], betas[1], gammas[2], betas[2]], 0)
    wf1 = jax.random.normal(ks[4], (D, F), jnp.float32) * scale
    bf1 = jax.random.normal(ks[5], (1, F), jnp.float32) * scale
    wf2 = jax.random.normal(ks[6], (F, D), jnp.float32) * scale
    bf2 = jax.random.normal(ks[7], (1, D), jnp.float32) * scale
    params = (w, b, lnp, wf1, bf1, wf2, bf2)

    # Inputs.
    emb = jax.random.normal(ks[8], (B, T, D), jnp.float32)
    enc_hidden = jax.random.normal(ks[9], (B, S, D), jnp.float32)
    causal = jnp.where(jnp.arange(T)[:, None] >= jnp.arange(T)[None, :], 0.0, -1e9).astype(jnp.float32)
    mask_m_trg = jnp.broadcast_to(causal, (B, T, T))
    mask_m_src = jnp.zeros((B, T, S), jnp.float32)

    out = decoder_layer(emb, enc_hidden, mask_m_trg, mask_m_src, params)
    out = jax.block_until_ready(out)

    ref = decoder_layer_ref(emb, enc_hidden, mask_m_trg, mask_m_src, params)
    assert out.shape == (B, T, D)
    assert bool(jnp.all(jnp.isfinite(out)))
    # Kernel runs its matmuls in bf16 (MXU-native) with f32 accumulation and uses an approximate
    # EUP reciprocal in the softmax; tolerance vs. the full-f32 reference is set accordingly.
    assert bool(jnp.allclose(out, ref, atol=2e-2, rtol=2e-2)), "mismatch vs pure-JAX reference"

    print("KERNEL_OK")
</pallas_src>

<mosaic_0001>
module attributes {stable_mosaic.version = 11 : i64} {
  func.func @decoder_layer_kernel(%arg0: memref<16x32xf32, #tpu.memory_space<vmem>>, %arg1: memref<16x32xf32, #tpu.memory_space<vmem>>, %arg2: memref<16x64xf32, #tpu.memory_space<vmem>>, %arg3: memref<16x64xf32, #tpu.memory_space<vmem>>, %arg4: memref<64x64xf32, #tpu.memory_space<vmem>>, %arg5: memref<64x32xbf16, #tpu.memory_space<vmem>>, %arg6: memref<64x64xf32, #tpu.memory_space<vmem>>, %arg7: memref<64x32xbf16, #tpu.memory_space<vmem>>, %arg8: memref<32x96xbf16, #tpu.memory_space<vmem>>, %arg9: memref<1x96xf32, #tpu.memory_space<vmem>>, %arg10: memref<32x64xbf16, #tpu.memory_space<vmem>>, %arg11: memref<1x64xf32, #tpu.memory_space<vmem>>, %arg12: memref<3x32x32xbf16, #tpu.memory_space<vmem>>, %arg13: memref<3x32xf32, #tpu.memory_space<vmem>>, %arg14: memref<6x32xf32, #tpu.memory_space<vmem>>, %arg15: memref<32x64xbf16, #tpu.memory_space<vmem>>, %arg16: memref<1x64xf32, #tpu.memory_space<vmem>>, %arg17: memref<64x32xbf16, #tpu.memory_space<vmem>>, %arg18: memref<1x32xf32, #tpu.memory_space<vmem>>, %arg19: memref<16x32xf32, #tpu.memory_space<vmem>>) attributes {dimension_semantics = [], scalar_prefetch = 0 : i64, scratch_operands = 0 : i64, tpu.core_type = #tpu.core_type<tc>} {
    %c0 = arith.constant 0 : index
    %c0_0 = arith.constant 0 : index
    %0 = vector.load %arg0[%c0, %c0_0] : memref<16x32xf32, #tpu.memory_space<vmem>>, vector<16x32xf32>
    %c0_1 = arith.constant 0 : index
    %c0_2 = arith.constant 0 : index
    %1 = vector.load %arg1[%c0_1, %c0_2] : memref<16x32xf32, #tpu.memory_space<vmem>>, vector<16x32xf32>
    %2 = arith.truncf %0 : vector<16x32xf32> to vector<16x32xbf16>
    %c0_3 = arith.constant 0 : index
    %c0_4 = arith.constant 0 : index
    %3 = vector.load %arg8[%c0_3, %c0_4] : memref<32x96xbf16, #tpu.memory_space<vmem>>, vector<32x96xbf16>
    %cst = arith.constant dense<0.000000e+00> : vector<16x96xf32>
    %4 = tpu.matmul %2, %3, %cst {dimension_numbers = #tpu.dot_dimension_numbers<[1], [0], [0], [1], [0, 0, 1, 1], [], []>} : vector<16x32xbf16>, vector<32x96xbf16>, vector<16x96xf32> -> vector<16x96xf32>
    %c0_5 = arith.constant 0 : index
    %c0_6 = arith.constant 0 : index
    %5 = vector.load %arg9[%c0_5, %c0_6] : memref<1x96xf32, #tpu.memory_space<vmem>>, vector<1x96xf32>
    %6 = vector.broadcast %5 : vector<1x96xf32> to vector<16x96xf32>
    %7 = arith.addf %4, %6 : vector<16x96xf32>
    %8 = vector.extract_strided_slice %7 {offsets = [0, 0], sizes = [16, 32], strides = [1, 1]} : vector<16x96xf32> to vector<16x32xf32>
    %9 = vector.extract_strided_slice %7 {offsets = [0, 32], sizes = [16, 64], strides = [1, 1]} : vector<16x96xf32> to vector<16x64xf32>
    %c0_7 = arith.constant 0 : index
    %c0_8 = arith.constant 0 : index
    %10 = vector.load %arg2[%c0_7, %c0_8] : memref<16x64xf32, #tpu.memory_space<vmem>>, vector<16x64xf32>
    %c0_9 = arith.constant 0 : index
    %c0_10 = arith.constant 0 : index
    %11 = vector.load %arg4[%c0_9, %c0_10] : memref<64x64xf32, #tpu.memory_space<vmem>>, vector<64x64xf32>
    %c0_11 = arith.constant 0 : index
    %c0_12 = arith.constant 0 : index
    %12 = vector.load %arg5[%c0_11, %c0_12] : memref<64x32xbf16, #tpu.memory_space<vmem>>, vector<64x32xbf16>
    %13 = tpu.concatenate %9, %9, %9, %9 in 0 : vector<16x64xf32>, vector<16x64xf32>, vector<16x64xf32>, vector<16x64xf32> -> vector<64x64xf32>
    %14 = arith.mulf %13, %11 : vector<64x64xf32>
    %15 = arith.truncf %14 : vector<64x64xf32> to vector<64x64xbf16>
    %16 = vector.extract_strided_slice %15 {offsets = [0, 0], sizes = [64, 32], strides = [1, 1]} : vector<64x64xbf16> to vector<64x32xbf16>
    %17 = vector.extract_strided_slice %15 {offsets = [0, 32], sizes = [64, 32], strides = [1, 1]} : vector<64x64xbf16> to vector<64x32xbf16>
    %18 = tpu.concatenate %17, %12 in 1 : vector<64x32xbf16>, vector<64x32xbf16> -> vector<64x64xbf16>
    %cst_13 = arith.constant 0.353553385 : f32
    %19 = vector.broadcast %cst_13 : f32 to vector<16x32xf32>
    %20 = arith.mulf %8, %19 : vector<16x32xf32>
    %21 = arith.truncf %20 : vector<16x32xf32> to vector<16x32xbf16>
    "tpu.trace_start"() <{level = 10 : i32, message = "td,nd->tn"}> : () -> ()
    %cst_14 = arith.constant dense<0.000000e+00> : vector<16x64xf32>
    %22 = tpu.matmul %21, %16, %cst_14 {dimension_numbers = #tpu.dot_dimension_numbers<[1], [1], [0], [0], [0, 0, 1, 0], [], []>} : vector<16x32xbf16>, vector<64x32xbf16>, vector<16x64xf32> -> vector<16x64xf32>
    "tpu.trace_stop"() : () -> ()
    %23 = arith.addf %22, %10 : vector<16x64xf32>
    %cst_15 = arith.constant dense<0xFF800000> : vector<16xf32>
    %24 = vector.multi_reduction <maximumf>, %23, %cst_15 [1] : vector<16x64xf32> to vector<16xf32>
    %25 = vector.shape_cast %24 : vector<16xf32> to vector<16x1xf32>
    %26 = vector.broadcast %25 : vector<16x1xf32> to vector<16x64xf32>
    %27 = arith.subf %23, %26 : vector<16x64xf32>
    %28 = math.exp %27 : vector<16x64xf32>
    %29 = arith.truncf %28 : vector<16x64xf32> to vector<16x64xbf16>
    %cst_16 = arith.constant dense<0.000000e+00> : vector<16x64xf32>
    %30 = tpu.matmul %29, %18, %cst_16 {dimension_numbers = #tpu.dot_dimension_numbers<[1], [0], [0], [1], [0, 0, 1, 1], [], []>} : vector<16x64xbf16>, vector<64x64xbf16>, vector<16x64xf32> -> vector<16x64xf32>
    %31 = vector.extract_strided_slice %30 {offsets = [0, 0], sizes = [16, 32], strides = [1, 1]} : vector<16x64xf32> to vector<16x32xf32>
    %32 = vector.extract_strided_slice %30 {offsets = [0, 32], sizes = [16, 32], strides = [1, 1]} : vector<16x64xf32> to vector<16x32xf32>
    %cst_17 = arith.constant 1.000000e-30 : f32
    %33 = vector.broadcast %cst_17 : f32 to vector<16x32xf32>
    %34 = arith.maximumf %32, %33 : vector<16x32xf32>
    %35 = tpu.reciprocal %34 {approx = true} : vector<16x32xf32> -> vector<16x32xf32>
    %36 = arith.mulf %31, %35 : vector<16x32xf32>
    %c0_18 = arith.constant 0 : index
    %c0_19 = arith.constant 0 : index
    %c0_20 = arith.constant 0 : index
    %37 = vector.load %arg12[%c0_18, %c0_19, %c0_20] : memref<3x32x32xbf16, #tpu.memory_space<vmem>>, vector<1x32x32xbf16>
    %38 = vector.shape_cast %37 : vector<1x32x32xbf16> to vector<32x32xbf16>
    %c0_21 = arith.constant 0 : index
    %c0_22 = arith.constant 0 : index
    %39 = vector.load %arg13[%c0_21, %c0_22] : memref<3x32xf32, #tpu.memory_space<vmem>>, vector<1x32xf32>
    %40 = arith.truncf %36 : vector<16x32xf32> to vector<16x32xbf16>
    %cst_23 = arith.constant dense<0.000000e+00> : vector<16x32xf32>
    %41 = tpu.matmul %40, %38, %cst_23 {dimension_numbers = #tpu.dot_dimension_numbers<[1], [0], [0], [1], [0, 0, 1, 1], [], []>} : vector<16x32xbf16>, vector<32x32xbf16>, vector<16x32xf32> -> vector<16x32xf32>
    %42 = vector.broadcast %39 : vector<1x32xf32> to vector<16x32xf32>
    %43 = arith.addf %41, %42 : vector<16x32xf32>
    %44 = arith.addf %0, %43 : vector<16x32xf32>
    %c0_24 = arith.constant 0 : index
    %c0_25 = arith.constant 0 : index
    %45 = vector.load %arg14[%c0_24, %c0_25] : memref<6x32xf32, #tpu.memory_space<vmem>>, vector<1x32xf32>
    %c1 = arith.constant 1 : index
    %c0_26 = arith.constant 0 : index
    %46 = vector.load %arg14[%c1, %c0_26] : memref<6x32xf32, #tpu.memory_space<vmem>>, vector<1x32xf32>
    %cst_27 = arith.constant dense<0.000000e+00> : vector<16xf32>
    %47 = vector.multi_reduction <add>, %44, %cst_27 [1] : vector<16x32xf32> to vector<16xf32>
    %48 = vector.shape_cast %47 : vector<16xf32> to vector<16x1xf32>
    %cst_28 = arith.constant 3.200000e+01 : f32
    %49 = vector.broadcast %cst_28 : f32 to vector<16x1xf32>
    %50 = arith.divf %48, %49 : vector<16x1xf32>
    %51 = vector.broadcast %50 : vector<16x1xf32> to vector<16x32xf32>
    %52 = arith.subf %44, %51 : vector<16x32xf32>
    %53 = arith.mulf %52, %52 : vector<16x32xf32>
    %cst_29 = arith.constant dense<0.000000e+00> : vector<16xf32>
    %54 = vector.multi_reduction <add>, %53, %cst_29 [1] : vector<16x32xf32> to vector<16xf32>
    %55 = vector.shape_cast %54 : vector<16xf32> to vector<16x1xf32>
    %cst_30 = arith.constant 3.200000e+01 : f32
    %56 = vector.broadcast %cst_30 : f32 to vector<16x1xf32>
    %57 = arith.divf %55, %56 : vector<16x1xf32>
    %cst_31 = arith.constant 9.99999974E-6 : f32
    %58 = vector.broadcast %cst_31 : f32 to vector<16x1xf32>
    %59 = arith.addf %57, %58 : vector<16x1xf32>
    %60 = math.rsqrt %59 : vector<16x1xf32>
    %61 = vector.broadcast %60 : vector<16x1xf32> to vector<16x32xf32>
    %62 = arith.mulf %52, %61 : vector<16x32xf32>
    %63 = vector.broadcast %45 : vector<1x32xf32> to vector<16x32xf32>
    %64 = arith.mulf %62, %63 : vector<16x32xf32>
    %65 = vector.broadcast %46 : vector<1x32xf32> to vector<16x32xf32>
    %66 = arith.addf %64, %65 : vector<16x32xf32>
    %67 = arith.truncf %66 : vector<16x32xf32> to vector<16x32xbf16>
    %c1_32 = arith.constant 1 : index
    %c0_33 = arith.constant 0 : index
    %c0_34 = arith.constant 0 : index
    %68 = vector.load %arg12[%c1_32, %c0_33, %c0_34] : memref<3x32x32xbf16, #tpu.memory_space<vmem>>, vector<1x32x32xbf16>
    %69 = vector.shape_cast %68 : vector<1x32x32xbf16> to vector<32x32xbf16>
    %cst_35 = arith.constant dense<0.000000e+00> : vector<16x32xf32>
    %70 = tpu.matmul %67, %69, %cst_35 {dimension_numbers = #tpu.dot_dimension_numbers<[1], [0], [0], [1], [0, 0, 1, 1], [], []>} : vector<16x32xbf16>, vector<32x32xbf16>, vector<16x32xf32> -> vector<16x32xf32>
    %c1_36 = arith.constant 1 : index
    %c0_37 = arith.constant 0 : index
    %71 = vector.load %arg13[%c1_36, %c0_37] : memref<3x32xf32, #tpu.memory_space<vmem>>, vector<1x32xf32>
    %72 = vector.broadcast %71 : vector<1x32xf32> to vector<16x32xf32>
    %73 = arith.addf %70, %72 : vector<16x32xf32>
    %74 = arith.truncf %1 : vector<16x32xf32> to vector<16x32xbf16>
    %c0_38 = arith.constant 0 : index
    %c0_39 = arith.constant 0 : index
    %75 = vector.load %arg10[%c0_38, %c0_39] : memref<32x64xbf16, #tpu.memory_space<vmem>>, vector<32x64xbf16>
    %cst_40 = arith.constant dense<0.000000e+00> : vector<16x64xf32>
    %76 = tpu.matmul %74, %75, %cst_40 {dimension_numbers = #tpu.dot_dimension_numbers<[1], [0], [0], [1], [0, 0, 1, 1], [], []>} : vector<16x32xbf16>, vector<32x64xbf16>, vector<16x64xf32> -> vector<16x64xf32>
    %c0_41 = arith.constant 0 : index
    %c0_42 = arith.constant 0 : index
    %77 = vector.load %arg11[%c0_41, %c0_42] : memref<1x64xf32, #tpu.memory_space<vmem>>, vector<1x64xf32>
    %78 = vector.broadcast %77 : vector<1x64xf32> to vector<16x64xf32>
    %79 = arith.addf %76, %78 : vector<16x64xf32>
    %c0_43 = arith.constant 0 : index
    %c0_44 = arith.constant 0 : index
    %80 = vector.load %arg3[%c0_43, %c0_44] : memref<16x64xf32, #tpu.memory_space<vmem>>, vector<16x64xf32>
    %c0_45 = arith.constant 0 : index
    %c0_46 = arith.constant 0 : index
    %81 = vector.load %arg6[%c0_45, %c0_46] : memref<64x64xf32, #tpu.memory_space<vmem>>, vector<64x64xf32>
    %c0_47 = arith.constant 0 : index
    %c0_48 = arith.constant 0 : index
    %82 = vector.load %arg7[%c0_47, %c0_48] : memref<64x32xbf16, #tpu.memory_space<vmem>>, vector<64x32xbf16>
    %83 = tpu.concatenate %79, %79, %79, %79 in 0 : vector<16x64xf32>, vector<16x64xf32>, vector<16x64xf32>, vector<16x64xf32> -> vector<64x64xf32>
    %84 = arith.mulf %83, %81 : vector<64x64xf32>
    %85 = arith.truncf %84 : vector<64x64xf32> to vector<64x64xbf16>
    %86 = vector.extract_strided_slice %85 {offsets = [0, 0], sizes = [64, 32], strides = [1, 1]} : vector<64x64xbf16> to vector<64x32xbf16>
    %87 = vector.extract_strided_slice %85 {offsets = [0, 32], sizes = [64, 32], strides = [1, 1]} : vector<64x64xbf16> to vector<64x32xbf16>
    %88 = tpu.concatenate %87, %82 in 1 : vector<64x32xbf16>, vector<64x32xbf16> -> vector<64x64xbf16>
    %cst_49 = arith.constant 0.353553385 : f32
    %89 = vector.broadcast %cst_49 : f32 to vector<16x32xf32>
    %90 = arith.mulf %73, %89 : vector<16x32xf32>
    %91 = arith.truncf %90 : vector<16x32xf32> to vector<16x32xbf16>
    "tpu.trace_start"() <{level = 10 : i32, message = "td,nd->tn"}> : () -> ()
    %cst_50 = arith.constant dense<0.000000e+00> : vector<16x64xf32>
    %92 = tpu.matmul %91, %86, %cst_50 {dimension_numbers = #tpu.dot_dimension_numbers<[1], [1], [0], [0], [0, 0, 1, 0], [], []>} : vector<16x32xbf16>, vector<64x32xbf16>, vector<16x64xf32> -> vector<16x64xf32>
    "tpu.trace_stop"() : () -> ()
    %93 = arith.addf %92, %80 : vector<16x64xf32>
    %cst_51 = arith.constant dense<0xFF800000> : vector<16xf32>
    %94 = vector.multi_reduction <maximumf>, %93, %cst_51 [1] : vector<16x64xf32> to vector<16xf32>
    %95 = vector.shape_cast %94 : vector<16xf32> to vector<16x1xf32>
    %96 = vector.broadcast %95 : vector<16x1xf32> to vector<16x64xf32>
    %97 = arith.subf %93, %96 : vector<16x64xf32>
    %98 = math.exp %97 : vector<16x64xf32>
    %99 = arith.truncf %98 : vector<16x64xf32> to vector<16x64xbf16>
    %cst_52 = arith.constant dense<0.000000e+00> : vector<16x64xf32>
    %100 = tpu.matmul %99, %88, %cst_52 {dimension_numbers = #tpu.dot_dimension_numbers<[1], [0], [0], [1], [0, 0, 1, 1], [], []>} : vector<16x64xbf16>, vector<64x64xbf16>, vector<16x64xf32> -> vector<16x64xf32>
    %101 = vector.extract_strided_slice %100 {offsets = [0, 0], sizes = [16, 32], strides = [1, 1]} : vector<16x64xf32> to vector<16x32xf32>
    %102 = vector.extract_strided_slice %100 {offsets = [0, 32], sizes = [16, 32], strides = [1, 1]} : vector<16x64xf32> to vector<16x32xf32>
    %cst_53 = arith.constant 1.000000e-30 : f32
    %103 = vector.broadcast %cst_53 : f32 to vector<16x32xf32>
    %104 = arith.maximumf %102, %103 : vector<16x32xf32>
    %105 = tpu.reciprocal %104 {approx = true} : vector<16x32xf32> -> vector<16x32xf32>
    %106 = arith.mulf %101, %105 : vector<16x32xf32>
    %c2 = arith.constant 2 : index
    %c0_54 = arith.constant 0 : index
    %c0_55 = arith.constant 0 : index
    %107 = vector.load %arg12[%c2, %c0_54, %c0_55] : memref<3x32x32xbf16, #tpu.memory_space<vmem>>, vector<1x32x32xbf16>
    %108 = vector.shape_cast %107 : vector<1x32x32xbf16> to vector<32x32xbf16>
    %c2_56 = arith.constant 2 : index
    %c0_57 = arith.constant 0 : index
    %109 = vector.load %arg13[%c2_56, %c0_57] : memref<3x32xf32, #tpu.memory_space<vmem>>, vector<1x32xf32>
    %110 = arith.truncf %106 : vector<16x32xf32> to vector<16x32xbf16>
    %cst_58 = arith.constant dense<0.000000e+00> : vector<16x32xf32>
    %111 = tpu.matmul %110, %108, %cst_58 {dimension_numbers = #tpu.dot_dimension_numbers<[1], [0], [0], [1], [0, 0, 1, 1], [], []>} : vector<16x32xbf16>, vector<32x32xbf16>, vector<16x32xf32> -> vector<16x32xf32>
    %112 = vector.broadcast %109 : vector<1x32xf32> to vector<16x32xf32>
    %113 = arith.addf %111, %112 : vector<16x32xf32>
    %114 = arith.addf %66, %113 : vector<16x32xf32>
    %c2_59 = arith.constant 2 : index
    %c0_60 = arith.constant 0 : index
    %115 = vector.load %arg14[%c2_59, %c0_60] : memref<6x32xf32, #tpu.memory_space<vmem>>, vector<1x32xf32>
    %c3 = arith.constant 3 : index
    %c0_61 = arith.constant 0 : index
    %116 = vector.load %arg14[%c3, %c0_61] : memref<6x32xf32, #tpu.memory_space<vmem>>, vector<1x32xf32>
    %cst_62 = arith.constant dense<0.000000e+00> : vector<16xf32>
    %117 = vector.multi_reduction <add>, %114, %cst_62 [1] : vector<16x32xf32> to vector<16xf32>
    %118 = vector.shape_cast %117 : vector<16xf32> to vector<16x1xf32>
    %cst_63 = arith.constant 3.200000e+01 : f32
    %119 = vector.broadcast %cst_63 : f32 to vector<16x1xf32>
    %120 = arith.divf %118, %119 : vector<16x1xf32>
    %121 = vector.broadcast %120 : vector<16x1xf32> to vector<16x32xf32>
    %122 = arith.subf %114, %121 : vector<16x32xf32>
    %123 = arith.mulf %122, %122 : vector<16x32xf32>
    %cst_64 = arith.constant dense<0.000000e+00> : vector<16xf32>
    %124 = vector.multi_reduction <add>, %123, %cst_64 [1] : vector<16x32xf32> to vector<16xf32>
    %125 = vector.shape_cast %124 : vector<16xf32> to vector<16x1xf32>
    %cst_65 = arith.constant 3.200000e+01 : f32
    %126 = vector.broadcast %cst_65 : f32 to vector<16x1xf32>
    %127 = arith.divf %125, %126 : vector<16x1xf32>
    %cst_66 = arith.constant 9.99999974E-6 : f32
    %128 = vector.broadcast %cst_66 : f32 to vector<16x1xf32>
    %129 = arith.addf %127, %128 : vector<16x1xf32>
    %130 = math.rsqrt %129 : vector<16x1xf32>
    %131 = vector.broadcast %130 : vector<16x1xf32> to vector<16x32xf32>
    %132 = arith.mulf %122, %131 : vector<16x32xf32>
    %133 = vector.broadcast %115 : vector<1x32xf32> to vector<16x32xf32>
    %134 = arith.mulf %132, %133 : vector<16x32xf32>
    %135 = vector.broadcast %116 : vector<1x32xf32> to vector<16x32xf32>
    %136 = arith.addf %134, %135 : vector<16x32xf32>
    %137 = arith.truncf %136 : vector<16x32xf32> to vector<16x32xbf16>
    %c0_67 = arith.constant 0 : index
    %c0_68 = arith.constant 0 : index
    %138 = vector.load %arg15[%c0_67, %c0_68] : memref<32x64xbf16, #tpu.memory_space<vmem>>, vector<32x64xbf16>
    %cst_69 = arith.constant dense<0.000000e+00> : vector<16x64xf32>
    %139 = tpu.matmul %137, %138, %cst_69 {dimension_numbers = #tpu.dot_dimension_numbers<[1], [0], [0], [1], [0, 0, 1, 1], [], []>} : vector<16x32xbf16>, vector<32x64xbf16>, vector<16x64xf32> -> vector<16x64xf32>
    %c0_70 = arith.constant 0 : index
    %c0_71 = arith.constant 0 : index
    %140 = vector.load %arg16[%c0_70, %c0_71] : memref<1x64xf32, #tpu.memory_space<vmem>>, vector<1x64xf32>
    %141 = vector.broadcast %140 : vector<1x64xf32> to vector<16x64xf32>
    %142 = arith.addf %139, %141 : vector<16x64xf32>
    %cst_72 = arith.constant 0.000000e+00 : f32
    %143 = vector.broadcast %cst_72 : f32 to vector<16x64xf32>
    %144 = arith.maximumf %142, %143 : vector<16x64xf32>
    %145 = arith.truncf %144 : vector<16x64xf32> to vector<16x64xbf16>
    %c0_73 = arith.constant 0 : index
    %c0_74 = arith.constant 0 : index
    %146 = vector.load %arg17[%c0_73, %c0_74] : memref<64x32xbf16, #tpu.memory_space<vmem>>, vector<64x32xbf16>
    %cst_75 = arith.constant dense<0.000000e+00> : vector<16x32xf32>
    %147 = tpu.matmul %145, %146, %cst_75 {dimension_numbers = #tpu.dot_dimension_numbers<[1], [0], [0], [1], [0, 0, 1, 1], [], []>} : vector<16x64xbf16>, vector<64x32xbf16>, vector<16x32xf32> -> vector<16x32xf32>
    %c0_76 = arith.constant 0 : index
    %c0_77 = arith.constant 0 : index
    %148 = vector.load %arg18[%c0_76, %c0_77] : memref<1x32xf32, #tpu.memory_space<vmem>>, vector<1x32xf32>
    %149 = vector.broadcast %148 : vector<1x32xf32> to vector<16x32xf32>
    %150 = arith.addf %147, %149 : vector<16x32xf32>
    %151 = arith.addf %136, %150 : vector<16x32xf32>
    %c4 = arith.constant 4 : index
    %c0_78 = arith.constant 0 : index
    %152 = vector.load %arg14[%c4, %c0_78] : memref<6x32xf32, #tpu.memory_space<vmem>>, vector<1x32xf32>
    %c5 = arith.constant 5 : index
    %c0_79 = arith.constant 0 : index
    %153 = vector.load %arg14[%c5, %c0_79] : memref<6x32xf32, #tpu.memory_space<vmem>>, vector<1x32xf32>
    %cst_80 = arith.constant dense<0.000000e+00> : vector<16xf32>
    %154 = vector.multi_reduction <add>, %151, %cst_80 [1] : vector<16x32xf32> to vector<16xf32>
    %155 = vector.shape_cast %154 : vector<16xf32> to vector<16x1xf32>
    %cst_81 = arith.constant 3.200000e+01 : f32
    %156 = vector.broadcast %cst_81 : f32 to vector<16x1xf32>
    %157 = arith.divf %155, %156 : vector<16x1xf32>
    %158 = vector.broadcast %157 : vector<16x1xf32> to vector<16x32xf32>
    %159 = arith.subf %151, %158 : vector<16x32xf32>
    %160 = arith.mulf %159, %159 : vector<16x32xf32>
    %cst_82 = arith.constant dense<0.000000e+00> : vector<16xf32>
    %161 = vector.multi_reduction <add>, %160, %cst_82 [1] : vector<16x32xf32> to vector<16xf32>
    %162 = vector.shape_cast %161 : vector<16xf32> to vector<16x1xf32>
    %cst_83 = arith.constant 3.200000e+01 : f32
    %163 = vector.broadcast %cst_83 : f32 to vector<16x1xf32>
    %164 = arith.divf %162, %163 : vector<16x1xf32>
    %cst_84 = arith.constant 9.99999974E-6 : f32
    %165 = vector.broadcast %cst_84 : f32 to vector<16x1xf32>
    %166 = arith.addf %164, %165 : vector<16x1xf32>
    %167 = math.rsqrt %166 : vector<16x1xf32>
    %168 = vector.broadcast %167 : vector<16x1xf32> to vector<16x32xf32>
    %169 = arith.mulf %159, %168 : vector<16x32xf32>
    %170 = vector.broadcast %152 : vector<1x32xf32> to vector<16x32xf32>
    %171 = arith.mulf %169, %170 : vector<16x32xf32>
    %172 = vector.broadcast %153 : vector<1x32xf32> to vector<16x32xf32>
    %173 = arith.addf %171, %172 : vector<16x32xf32>
    %c0_85 = arith.constant 0 : index
    %c0_86 = arith.constant 0 : index
    %174 = vector.load %arg19[%c0_85, %c0_86] : memref<16x32xf32, #tpu.memory_space<vmem>>, vector<16x32xf32>
    tpu.vector_store %arg19[%c0_85, %c0_86], %173 {strides = array<i32>} : memref<16x32xf32, #tpu.memory_space<vmem>>, vector<16x32xf32>,
    return
  }
}

</mosaic_0001>

<llo_original>
// kernel: tpu_custom_call.1
$region0: #{tpu_custom_call.1}
  #allocation0 [shape = 'u32[]', space=smem, size = 0x4, offset = 0x4, fixed_abs, tag = 'smem constant byte address 0x4 - core index']
  #allocation1 [shape = 'u32[72,128]{1,0:T(1,128)}', space=vmem, size = 0x9000, scoped, tag = 'internal scratch']
  %s0 = inlined_call_operand.hbm [shape: f32[16,32], index: 0, kind: input, shape index: {}]
  %s1 = inlined_call_operand.hbm [shape: f32[16,32], index: 1, kind: input, shape index: {}]
  %s2 = inlined_call_operand.hbm [shape: f32[16,64], index: 2, kind: input, shape index: {}]
  %s3 = inlined_call_operand.hbm [shape: f32[16,64], index: 3, kind: input, shape index: {}]
  %s4 = inlined_call_operand.vmem [shape: f32[64,64], index: 4, kind: input, shape index: {}]
  %s5 = inlined_call_operand.vmem [shape: bf16[64,32], index: 5, kind: input, shape index: {}]
  %s6 = inlined_call_operand.hbm [shape: f32[64,64], index: 6, kind: input, shape index: {}]
  %s7 = inlined_call_operand.vmem [shape: bf16[64,32], index: 7, kind: input, shape index: {}]
  %s8 = inlined_call_operand.hbm [shape: bf16[32,96], index: 8, kind: input, shape index: {}]
  %s9 = inlined_call_operand.vmem [shape: f32[1,96], index: 9, kind: input, shape index: {}]
  %s10 = inlined_call_operand.hbm [shape: bf16[32,64], index: 10, kind: input, shape index: {}]
  %s11 = inlined_call_operand.hbm [shape: f32[1,64], index: 11, kind: input, shape index: {}]
  %s12 = inlined_call_operand.vmem [shape: bf16[3,32,32], index: 12, kind: input, shape index: {}]
  %s13 = inlined_call_operand.hbm [shape: f32[3,32], index: 13, kind: input, shape index: {}]
  %s14 = inlined_call_operand.vmem [shape: f32[6,32], index: 14, kind: input, shape index: {}]
  %s15 = inlined_call_operand.hbm [shape: bf16[32,64], index: 15, kind: input, shape index: {}]
  %s16 = inlined_call_operand.vmem [shape: f32[1,64], index: 16, kind: input, shape index: {}]
  %s17 = inlined_call_operand.vmem [shape: bf16[64,32], index: 17, kind: input, shape index: {}]
  %s18 = inlined_call_operand.vmem [shape: f32[1,32], index: 18, kind: input, shape index: {}]
  %s19 = inlined_call_operand.hbm [shape: f32[16,32], index: 19, kind: output, shape index: {}]
  %s20 = sld [smem:[#allocation0]]
  $region126: #{tpu_custom_call.1} parent=0
    _
  %s22 = ssub.s32 1, %s20
  %s23 = scalar_select 0, %s22, %s20
  $region1: #{tpu_custom_call.1} parent=0
    #allocation2 [shape = 'u8[8192]{0}', space=vmem, size = 0x2000, scoped, tag = 'input window, operand 0, single buffered']
    #allocation3 [shape = 's32[1]{0}', space=sflag, size = 0x4, scoped, tag = 'scoped memory for tpu_custom_call.1']
    #allocation4 [shape = 's32[1]{0}', space=sflag, size = 0x4, scoped, tag = 'scoped memory for tpu_custom_call.1']
    #allocation5 [shape = 'u8[8192]{0}', space=vmem, size = 0x2000, scoped, tag = 'input window, operand 1, single buffered']
    #allocation6 [shape = 's32[1]{0}', space=sflag, size = 0x4, scoped, tag = 'scoped memory for tpu_custom_call.1']
    #allocation7 [shape = 'u8[8192]{0}', space=vmem, size = 0x2000, scoped, tag = 'input window, operand 2, single buffered']
    #allocation8 [shape = 'u8[8192]{0}', space=vmem, size = 0x2000, scoped, tag = 'input window, operand 3, single buffered']
    #allocation9 [shape = 's32[1]{0}', space=sflag, size = 0x4, scoped, tag = 'scoped memory for tpu_custom_call.1']
    #allocation10 [shape = 'u8[32768]{0}', space=vmem, size = 0x8000, scoped, tag = 'input window, operand 6, single buffered']
    #allocation11 [shape = 'u8[8192]{0}', space=vmem, size = 0x2000, scoped, tag = 'input window, operand 8, single buffered']
    #allocation12 [shape = 's32[1]{0}', space=sflag, size = 0x4, scoped, tag = 'scoped memory for tpu_custom_call.1']
    #allocation13 [shape = 'u8[8192]{0}', space=vmem, size = 0x2000, scoped, tag = 'input window, operand 10, single buffered']
    #allocation14 [shape = 'u8[512]{0}', space=vmem, size = 0x400, scoped, tag = 'input window, operand 11, single buffered']
    #allocation15 [shape = 's32[1]{0}', space=sflag, size = 0x4, scoped, tag = 'scoped memory for tpu_custom_call.1']
    #allocation16 [shape = 'u8[2048]{0}', space=vmem, size = 0x800, scoped, tag = 'input window, operand 13, single buffered']
    #allocation17 [shape = 'u8[8192]{0}', space=vmem, size = 0x2000, scoped, tag = 'input window, operand 15, single buffered']
    #allocation18 [shape = 's32[1]{0}', space=sflag, size = 0x4, scoped, tag = 'scoped memory for tpu_custom_call.1']
    #allocation19 [shape = 'u8[8192]{0}', space=vmem, size = 0x2000, scoped, tag = 'output window, operand 0, single buffered']
    %24 = vsyncpa [#allocation3], 0
    %25 = vsyncpa [#allocation6], 0
    %26 = vsyncpa [#allocation9], 0
    %27 = vsyncpa [#allocation12], 0
    %28 = vsyncpa [#allocation15], 0
    %29 = vsyncpa [#allocation18], 0
    %30 = vsyncpa [#allocation4], 0
    // Predicated region
    $region2: #{tpu_custom_call.1} parent=1 // pred_check
      _
    $region3: #{tpu_custom_call.1} parent=1 // pred_check_branch
      %32 = sbr.rel (0) target = $region5
    $region4: #{tpu_custom_call.1} parent=1 // pred_region
      %34 = vsyncadd [#allocation3], 0
      %s35 = sshll.u32 %s0, 4
      %s36 = int_to_ptr.hbm [resolvable:$true] %s35
      %s37 = sshll.u32 [#allocation2], 4
      %s38 = int_to_ptr.vmem [resolvable:$true] %s37
      %43 = dma.hbm_to_vmem [thread:$0]  %s36, 256, %s38, [#allocation3], 128, 128, 8
    $region5: #{tpu_custom_call.1} parent=1 // pred_fallthru
      _
    // Predicated region
    $region6: #{tpu_custom_call.1} parent=1 // pred_check
      _
    $region7: #{tpu_custom_call.1} parent=1 // pred_check_branch
      %45 = sbr.rel (0) target = $region9
    $region8: #{tpu_custom_call.1} parent=1 // pred_region
      %47 = vsyncadd [#allocation6], 0
      %s48 = sshll.u32 %s1, 4
      %s49 = int_to_ptr.hbm [resolvable:$true] %s48
      %s50 = sshll.u32 [#allocation5], 4
      %s51 = int_to_ptr.vmem [resolvable:$true] %s50
      %56 = dma.hbm_to_vmem [thread:$0]  %s49, 256, %s51, [#allocation6], 128, 128, 8
    $region9: #{tpu_custom_call.1} parent=1 // pred_fallthru
      _
    // Predicated region
    $region10: #{tpu_custom_call.1} parent=1 // pred_check
      _
    $region11: #{tpu_custom_call.1} parent=1 // pred_check_branch
      %58 = sbr.rel (0) target = $region13
    $region12: #{tpu_custom_call.1} parent=1 // pred_region
      %60 = vsyncadd [#allocation6], 0
      %s61 = sshll.u32 %s2, 4
      %s62 = int_to_ptr.hbm [resolvable:$true] %s61
      %s63 = sshll.u32 [#allocation7], 4
      %s64 = int_to_ptr.vmem [resolvable:$true] %s63
      %69 = dma.hbm_to_vmem [thread:$0]  %s62, 256, %s64, [#allocation6], 128, 128, 8
    $region13: #{tpu_custom_call.1} parent=1 // pred_fallthru
      _
    // Predicated region
    $region14: #{tpu_custom_call.1} parent=1 // pred_check
      _
    $region15: #{tpu_custom_call.1} parent=1 // pred_check_branch
      %71 = sbr.rel (0) target = $region17
    $region16: #{tpu_custom_call.1} parent=1 // pred_region
      %73 = vsyncadd [#allocation9], 0
      %s74 = sshll.u32 %s3, 4
      %s75 = int_to_ptr.hbm [resolvable:$true] %s74
      %s76 = sshll.u32 [#allocation8], 4
      %s77 = int_to_ptr.vmem [resolvable:$true] %s76
      %82 = dma.hbm_to_vmem [thread:$0]  %s75, 256, %s77, [#allocation9], 128, 128, 8
    $region17: #{tpu_custom_call.1} parent=1 // pred_fallthru
      _
    // Predicated region
    $region18: #{tpu_custom_call.1} parent=1 // pred_check
      _
    $region19: #{tpu_custom_call.1} parent=1 // pred_check_branch
      %84 = sbr.rel (0) target = $region21
    $region20: #{tpu_custom_call.1} parent=1 // pred_region
      _
    $region21: #{tpu_custom_call.1} parent=1 // pred_fallthru
      _
    // Predicated region
    $region22: #{tpu_custom_call.1} parent=1 // pred_check
      _
    $region23: #{tpu_custom_call.1} parent=1 // pred_check_branch
      %86 = sbr.rel (0) target = $region25
    $region24: #{tpu_custom_call.1} parent=1 // pred_region
      _
    $region25: #{tpu_custom_call.1} parent=1 // pred_fallthru
      _
    // Predicated region
    $region26: #{tpu_custom_call.1} parent=1 // pred_check
      _
    $region27: #{tpu_custom_call.1} parent=1 // pred_check_branch
      %88 = sbr.rel (0) target = $region29
    $region28: #{tpu_custom_call.1} parent=1 // pred_region
      %90 = vsyncadd [#allocation9], 0
      %s91 = sshll.u32 %s6, 4
      %s92 = int_to_ptr.hbm [resolvable:$true] %s91
      %s93 = sshll.u32 [#allocation10], 4
      %s94 = int_to_ptr.vmem [resolvable:$true] %s93
      %99 = dma.hbm_to_vmem [thread:$0]  %s92, 1024, %s94, [#allocation9], 128, 128, 8
    $region29: #{tpu_custom_call.1} parent=1 // pred_fallthru
      _
    // Predicated region
    $region30: #{tpu_custom_call.1} parent=1 // pred_check
      _
    $region31: #{tpu_custom_call.1} parent=1 // pred_check_branch
      %101 = sbr.rel (0) target = $region33
    $region32: #{tpu_custom_call.1} parent=1 // pred_region
      _
    $region33: #{tpu_custom_call.1} parent=1 // pred_fallthru
      _
    // Predicated region
    $region34: #{tpu_custom_call.1} parent=1 // pred_check
      _
    $region35: #{tpu_custom_call.1} parent=1 // pred_check_branch
      %103 = sbr.rel (0) target = $region37
    $region36: #{tpu_custom_call.1} parent=1 // pred_region
      %105 = vsyncadd [#allocation12], 0
      %s106 = sshll.u32 %s8, 4
      %s107 = int_to_ptr.hbm [resolvable:$true] %s106
      %s108 = sshll.u32 [#allocation11], 4
      %s109 = int_to_ptr.vmem [resolvable:$true] %s108
      %114 = dma.hbm_to_vmem [thread:$0]  %s107, 256, %s109, [#allocation12], 64, 64, 4
    $region37: #{tpu_custom_call.1} parent=1 // pred_fallthru
      _
    // Predicated region
    $region38: #{tpu_custom_call.1} parent=1 // pred_check
      _
    $region39: #{tpu_custom_call.1} parent=1 // pred_check_branch
      %116 = sbr.rel (0) target = $region41
    $region40: #{tpu_custom_call.1} parent=1 // pred_region
      _
    $region41: #{tpu_custom_call.1} parent=1 // pred_fallthru
      _
    // Predicated region
    $region42: #{tpu_custom_call.1} parent=1 // pred_check
      _
    $region43: #{tpu_custom_call.1} parent=1 // pred_check_branch
      %118 = sbr.rel (0) target = $region45
    $region44: #{tpu_custom_call.1} parent=1 // pred_region
      %120 = vsyncadd [#allocation12], 0
      %s121 = sshll.u32 %s10, 4
      %s122 = int_to_ptr.hbm [resolvable:$true] %s121
      %s123 = sshll.u32 [#allocation13], 4
      %s124 = int_to_ptr.vmem [resolvable:$true] %s123
      %129 = dma.hbm_to_vmem [thread:$0]  %s122, 256, %s124, [#allocation12], 64, 64, 4
    $region45: #{tpu_custom_call.1} parent=1 // pred_fallthru
      _
    // Predicated region
    $region46: #{tpu_custom_call.1} parent=1 // pred_check
      _
    $region47: #{tpu_custom_call.1} parent=1 // pred_check_branch
      %131 = sbr.rel (0) target = $region49
    $region48: #{tpu_custom_call.1} parent=1 // pred_region
      %133 = vsyncadd [#allocation15], 0
      %s135 = sshll.u32 %s11, 4
      %s136 = int_to_ptr.hbm [resolvable:$true] %s135
      %s137 = sshll.u32 [#allocation14], 4
      %s138 = int_to_ptr.vmem [resolvable:$true] %s137
      %140 = dma.hbm_to_vmem [thread:$0]  %s136, 16, %s138, [#allocation15]
    $region49: #{tpu_custom_call.1} parent=1 // pred_fallthru
      _
    // Predicated region
    $region50: #{tpu_custom_call.1} parent=1 // pred_check
      _
    $region51: #{tpu_custom_call.1} parent=1 // pred_check_branch
      %142 = sbr.rel (0) target = $region53
    $region52: #{tpu_custom_call.1} parent=1 // pred_region
      _
    $region53: #{tpu_custom_call.1} parent=1 // pred_fallthru
      _
    // Predicated region
    $region54: #{tpu_custom_call.1} parent=1 // pred_check
      _
    $region55: #{tpu_custom_call.1} parent=1 // pred_check_branch
      %144 = sbr.rel (0) target = $region57
    $region56: #{tpu_custom_call.1} parent=1 // pred_region
      %146 = vsyncadd [#allocation15], 0
      %s148 = sshll.u32 %s13, 4
      %s149 = int_to_ptr.hbm [resolvable:$true] %s148
      %s150 = sshll.u32 [#allocation16], 4
      %s151 = int_to_ptr.vmem [resolvable:$true] %s150
      %153 = dma.hbm_to_vmem [thread:$0]  %s149, 64, %s151, [#allocation15]
    $region57: #{tpu_custom_call.1} parent=1 // pred_fallthru
      _
    // Predicated region
    $region58: #{tpu_custom_call.1} parent=1 // pred_check
      _
    $region59: #{tpu_custom_call.1} parent=1 // pred_check_branch
      %155 = sbr.rel (0) target = $region61
    $region60: #{tpu_custom_call.1} parent=1 // pred_region
      _
    $region61: #{tpu_custom_call.1} parent=1 // pred_fallthru
      _
    // Predicated region
    $region62: #{tpu_custom_call.1} parent=1 // pred_check
      _
    $region63: #{tpu_custom_call.1} parent=1 // pred_check_branch
      %157 = sbr.rel (0) target = $region65
    $region64: #{tpu_custom_call.1} parent=1 // pred_region
      %159 = vsyncadd [#allocation18], 0
      %s160 = sshll.u32 %s15, 4
      %s161 = int_to_ptr.hbm [resolvable:$true] %s160
      %s162 = sshll.u32 [#allocation17], 4
      %s163 = int_to_ptr.vmem [resolvable:$true] %s162
      %168 = dma.hbm_to_vmem [thread:$0]  %s161, 256, %s163, [#allocation18], 64, 64, 4
    $region65: #{tpu_custom_call.1} parent=1 // pred_fallthru
      _
    // Predicated region
    $region66: #{tpu_custom_call.1} parent=1 // pred_check
      _
    $region67: #{tpu_custom_call.1} parent=1 // pred_check_branch
      %170 = sbr.rel (0) target = $region69
    $region68: #{tpu_custom_call.1} parent=1 // pred_region
      _
    $region69: #{tpu_custom_call.1} parent=1 // pred_fallthru
      _
    // Predicated region
    $region70: #{tpu_custom_call.1} parent=1 // pred_check
      _
    $region71: #{tpu_custom_call.1} parent=1 // pred_check_branch
      %172 = sbr.rel (0) target = $region73
    $region72: #{tpu_custom_call.1} parent=1 // pred_region
      _
    $region73: #{tpu_custom_call.1} parent=1 // pred_fallthru
      _
    // Predicated region
    $region74: #{tpu_custom_call.1} parent=1 // pred_check
      _
    $region75: #{tpu_custom_call.1} parent=1 // pred_check_branch
      %174 = sbr.rel (0) target = $region77
    $region76: #{tpu_custom_call.1} parent=1 // pred_region
      _
    $region77: #{tpu_custom_call.1} parent=1 // pred_fallthru
      _
    // Predicated region
    $region78: #{tpu_custom_call.1} parent=1 // pred_check
      _
    $region79: #{tpu_custom_call.1} parent=1 // pred_check_branch
      %176 = sbr.rel (0) target = $region81
    $region80: #{tpu_custom_call.1} parent=1 // pred_region
      %178 = dma.done [#allocation3], 256
    $region81: #{tpu_custom_call.1} parent=1 // pred_fallthru
      _
    // Predicated region
    $region82: #{tpu_custom_call.1} parent=1 // pred_check
      _
    $region83: #{tpu_custom_call.1} parent=1 // pred_check_branch
      %180 = sbr.rel (0) target = $region85
    $region84: #{tpu_custom_call.1} parent=1 // pred_region
      %182 = dma.done [#allocation6], 256
    $region85: #{tpu_custom_call.1} parent=1 // pred_fallthru
      _
    // Predicated region
    $region86: #{tpu_custom_call.1} parent=1 // pred_check
      _
    $region87: #{tpu_custom_call.1} parent=1 // pred_check_branch
      %184 = sbr.rel (0) target = $region89
    $region88: #{tpu_custom_call.1} parent=1 // pred_region
      %186 = dma.done [#allocation6], 256
    $region89: #{tpu_custom_call.1} parent=1 // pred_fallthru
      _
    // Predicated region
    $region90: #{tpu_custom_call.1} parent=1 // pred_check
      _
    $region91: #{tpu_custom_call.1} parent=1 // pred_check_branch
      %188 = sbr.rel (0) target = $region93
    $region92: #{tpu_custom_call.1} parent=1 // pred_region
      %190 = dma.done [#allocation9], 256
    $region93: #{tpu_custom_call.1} parent=1 // pred_fallthru
      _
    // Predicated region
    $region94: #{tpu_custom_call.1} parent=1 // pred_check
      _
    $region95: #{tpu_custom_call.1} parent=1 // pred_check_branch
      %192 = sbr.rel (0) target = $region97
    $region96: #{tpu_custom_call.1} parent=1 // pred_region
      %194 = dma.done [#allocation9], 1024
    $region97: #{tpu_custom_call.1} parent=1 // pred_fallthru
      _
    // Predicated region
    $region98: #{tpu_custom_call.1} parent=1 // pred_check
      _
    $region99: #{tpu_custom_call.1} parent=1 // pred_check_branch
      %196 = sbr.rel (0) target = $region101
    $region100: #{tpu_custom_call.1} parent=1 // pred_region
      %198 = dma.done [#allocation12], 256
    $region101: #{tpu_custom_call.1} parent=1 // pred_fallthru
      _
    // Predicated region
    $region102: #{tpu_custom_call.1} parent=1 // pred_check
      _
    $region103: #{tpu_custom_call.1} parent=1 // pred_check_branch
      %200 = sbr.rel (0) target = $region105
    $region104: #{tpu_custom_call.1} parent=1 // pred_region
      %202 = dma.done [#allocation12], 256
    $region105: #{tpu_custom_call.1} parent=1 // pred_fallthru
      _
    // Predicated region
    $region106: #{tpu_custom_call.1} parent=1 // pred_check
      _
    $region107: #{tpu_custom_call.1} parent=1 // pred_check_branch
      %204 = sbr.rel (0) target = $region109
    $region108: #{tpu_custom_call.1} parent=1 // pred_region
      %206 = dma.done [#allocation15], 16
    $region109: #{tpu_custom_call.1} parent=1 // pred_fallthru
      _
    // Predicated region
    $region110: #{tpu_custom_call.1} parent=1 // pred_check
      _
    $region111: #{tpu_custom_call.1} parent=1 // pred_check_branch
      %208 = sbr.rel (0) target = $region113
    $region112: #{tpu_custom_call.1} parent=1 // pred_region
      %210 = dma.done [#allocation15], 64
    $region113: #{tpu_custom_call.1} parent=1 // pred_fallthru
      _
    // Predicated region
    $region114: #{tpu_custom_call.1} parent=1 // pred_check
      _
    $region115: #{tpu_custom_call.1} parent=1 // pred_check_branch
      %212 = sbr.rel (0) target = $region117
    $region116: #{tpu_custom_call.1} parent=1 // pred_region
      %214 = dma.done [#allocation18], 256
    $region117: #{tpu_custom_call.1} parent=1 // pred_fallthru
      _
    %v216 = vld [vmem:[#allocation2] sm:$0xff]
    %v217 = vld [vmem:[#allocation2 + $0x8] sm:$0xff]
    %v218 = vld [vmem:[#allocation5] sm:$0xff]
    %v219 = vld [vmem:[#allocation5 + $0x8] sm:$0xff]
    %v220 = vpack.c.bf16 %v217, %v216
    %v221 = vld [vmem:[#allocation11] sm:$0xf]
    %v222 = vld [vmem:[#allocation11 + $0x4] sm:$0xf]
    %v223 = vld [vmem:[#allocation11 + $0x8] sm:$0xf]
    %v224 = vld [vmem:[#allocation11 + $0xc] sm:$0xf]
    %v225 = vld [vmem:[%s9] sm:$0x1]
    %v227 = vperm.slane %v225, 0
    %v233 = vunpack.c.l.b16 %v221
    %v234 = vunpack.c.l.b16 %v222
    %v235 = vunpack.c.l.b16 %v223
    %v236 = vunpack.c.l.b16 %v224
    %v237 = vpack.c.b16 %v234, %v233
    %v238 = vpack.c.b16 %v236, %v235
    %vm241 = vcmask 261120
    %v243 = vsel %vm241, %v220, 0
    %245 = vmatpush.bf16.msra.mxu0 0
    %246 = vmatpush.bf16.msra.mxu0 0
    %247 = vmatpush.bf16.msra.mxu0 0
    %248 = vmatpush.bf16.msra.mxu0 0
    %249 = vmatpush.bf16.msra.mxu0 0
    %250 = vmatpush.bf16.msra.mxu0 0
    %251 = vmatpush.bf16.msra.mxu0 %v238
    %252 = vmatpush.bf16.msra.mxu0 %v237
    %253 = vmatmul.bf16.gmra.mxu0 %v243
    %v254 = vpop.f32.mrf.mxu0
    %v255 = vadd.f32 %v227, %v254
    %v256 = vpop.f32.mrf.mxu0
    %v257 = vadd.f32 %v227, %v256
    %258 = vdwg.mxu0
    %v259 = vld [vmem:[#allocation7] sm:$0xff]
    %v260 = vld [vmem:[#allocation7 + $0x8] sm:$0xff]
    %v261 = vld [vmem:[%s4] sm:$0xff]
    %v262 = vld [vmem:[%s4 + $0x8] sm:$0xff]
    %v263 = vld [vmem:[%s4 + $0x10] sm:$0xff]
    %v264 = vld [vmem:[%s4 + $0x18] sm:$0xff]
    %v265 = vld [vmem:[%s4 + $0x20] sm:$0xff]
    %v266 = vld [vmem:[%s4 + $0x28] sm:$0xff]
    %v267 = vld [vmem:[%s4 + $0x30] sm:$0xff]
    %v268 = vld [vmem:[%s4 + $0x38] sm:$0xff]
    %v269 = vld [vmem:[%s5] sm:$0xf]
    %v270 = vld [vmem:[%s5 + $0x4] sm:$0xf]
    %v271 = vld [vmem:[%s5 + $0x8] sm:$0xf]
    %v272 = vld [vmem:[%s5 + $0xc] sm:$0xf]
    %v273 = vld [vmem:[%s5 + $0x10] sm:$0xf]
    %v274 = vld [vmem:[%s5 + $0x14] sm:$0xf]
    %v275 = vld [vmem:[%s5 + $0x18] sm:$0xf]
    %v276 = vld [vmem:[%s5 + $0x1c] sm:$0xf]
    %285 = vrot.lane.b32.xlu0 %v261, 32
    %v286 = vpop.permute.xlu0 %285
    %287 = vrot.lane.b32.xlu0 %v262, 32
    %v288 = vpop.permute.xlu0 %287
    %289 = vrot.lane.b32.xlu0 %v263, 32
    %v290 = vpop.permute.xlu0 %289
    %291 = vrot.lane.b32.xlu0 %v264, 32
    %v292 = vpop.permute.xlu0 %291
    %293 = vrot.lane.b32.xlu0 %v265, 32
    %v294 = vpop.permute.xlu0 %293
    %295 = vrot.lane.b32.xlu0 %v266, 32
    %v296 = vpop.permute.xlu0 %295
    %297 = vrot.lane.b32.xlu0 %v267, 32
    %v298 = vpop.permute.xlu0 %297
    %299 = vrot.lane.b32.xlu0 %v268, 32
    %v300 = vpop.permute.xlu0 %299
    %v309 = vmul.f32 %v255, %v286
    %v310 = vmul.f32 %v257, %v288
    %v311 = vmul.f32 %v255, %v290
    %v312 = vmul.f32 %v257, %v292
    %v313 = vmul.f32 %v255, %v294
    %v314 = vmul.f32 %v257, %v296
    %v315 = vmul.f32 %v255, %v298
    %v316 = vmul.f32 %v257, %v300
    %v317 = vpack.c.bf16 %v309, %v309
    %v318 = vpack.c.bf16 %v310, %v310
    %v319 = vpack.c.bf16 %v311, %v311
    %v320 = vpack.c.bf16 %v312, %v312
    %v321 = vpack.c.bf16 %v313, %v313
    %v322 = vpack.c.bf16 %v314, %v314
    %v323 = vpack.c.bf16 %v315, %v315
    %v324 = vpack.c.bf16 %v316, %v316
    %v333 = vunpack.c.l.b16 %v317
    %v334 = vunpack.c.l.b16 %v318
    %v335 = vunpack.c.l.b16 %v319
    %v336 = vunpack.c.l.b16 %v320
    %v337 = vunpack.c.l.b16 %v321
    %v338 = vunpack.c.l.b16 %v322
    %v339 = vunpack.c.l.b16 %v323
    %v340 = vunpack.c.l.b16 %v324
    %v341 = vpack.c.b16 %v334, %v333
    %v342 = vpack.c.b16 %v336, %v335
    %v343 = vpack.c.b16 %v338, %v337
    %v344 = vpack.c.b16 %v340, %v339
    %345 = vrot.lane.b32.xlu0 %v341, 64
    %v346 = vpop.permute.xlu0 %345
    %347 = vrot.lane.b32.xlu0 %v342, 64
    %v348 = vpop.permute.xlu0 %347
    %349 = vrot.lane.b32.xlu0 %v343, 64
    %v350 = vpop.permute.xlu0 %349
    %351 = vrot.lane.b32.xlu0 %v344, 64
    %v352 = vpop.permute.xlu0 %351
    %v361 = vunpack.c.l.b16 %v269
    %v362 = vunpack.c.l.b16 %v270
    %v363 = vunpack.c.l.b16 %v271
    %v364 = vunpack.c.l.b16 %v272
    %v365 = vunpack.c.l.b16 %v273
    %v366 = vunpack.c.l.b16 %v274
    %v367 = vunpack.c.l.b16 %v275
    %v368 = vunpack.c.l.b16 %v276
    %v369 = vpack.c.b16 %v362, %v361
    %v370 = vpack.c.b16 %v364, %v363
    %v371 = vpack.c.b16 %v366, %v365
    %v372 = vpack.c.b16 %v368, %v367
    %373 = vrot.lane.b32.xlu0 %v369, 32
    %v374 = vpop.permute.xlu0 %373
    %375 = vrot.lane.b32.xlu0 %v370, 32
    %v376 = vpop.permute.xlu0 %375
    %377 = vrot.lane.b32.xlu0 %v371, 32
    %v378 = vpop.permute.xlu0 %377
    %379 = vrot.lane.b32.xlu0 %v372, 32
    %v380 = vpop.permute.xlu0 %379
    %v383 = vsel %vm241, %v346, %v374
    %v387 = vsel %vm241, %v348, %v376
    %v391 = vsel %vm241, %v350, %v378
    %v395 = vsel %vm241, %v352, %v380
    %v397 = vmul.f32 %v255, 0.35355338
    %v398 = vmul.f32 %v257, 0.35355338
    %v399 = vpack.c.bf16 %v398, %v397
    %400 = vrot.lane.b32.xlu0 %v341, 96
    %v401 = vpop.permute.xlu0 %400
    %402 = vrot.lane.b32.xlu0 %v342, 96
    %v403 = vpop.permute.xlu0 %402
    %404 = vrot.lane.b32.xlu0 %v343, 96
    %v405 = vpop.permute.xlu0 %404
    %406 = vrot.lane.b32.xlu0 %v344, 96
    %v407 = vpop.permute.xlu0 %406
    %v409 = vsel %vm241, %v399, 0
    %v412 = vsel %vm241, %v401, 0
    %v415 = vsel %vm241, %v403, 0
    %v418 = vsel %vm241, %v405, 0
    %v421 = vsel %vm241, %v407, 0
    %423 = vmatpush.bf16.xpose.msra.mxu0 0
    %424 = vmatpush.bf16.xpose.msra.mxu0 0
    %425 = vmatpush.bf16.xpose.msra.mxu0 0
    %426 = vmatpush.bf16.xpose.msra.mxu0 0
    %427 = vmatpush.bf16.xpose.msra.mxu0 %v421
    %428 = vmatpush.bf16.xpose.msra.mxu0 %v418
    %429 = vmatpush.bf16.xpose.msra.mxu0 %v415
    %430 = vmatpush.bf16.xpose.msra.mxu0 %v412
    %431 = vmatmul.bf16.gmra.mxu0 %v409
    %v432 = vpop.f32.mrf.mxu0
    %v433 = vadd.f32 %v259, %v432
    %v434 = vpop.f32.mrf.mxu0
    %v435 = vadd.f32 %v260, %v434
    %436 = vdwg.mxu0
    %vm437 = vcmask 523264
    %v438 = vsel %vm437, %v433, -inf
    %439 = vmax.xlane.f32.xlu0 %v438
    %v440 = vpop.xlane.xlu0 %439
    %v441 = vsel %vm437, %v435, -inf
    %442 = vmax.xlane.f32.xlu0 %v441
    %v443 = vpop.xlane.xlu0 %442
    %v444 = vsub.f32 %v433, %v440
    %v445 = vsub.f32 %v435, %v443
    %v446 = vmul.f32 %v444, 1.442695
    %v447 = vpow.pop %v446
    %v448 = vmul.f32 %v445, 1.442695
    %v449 = vpow.pop %v448
    %v450 = vpack.c.bf16 %v449, %v447
    %v452 = vsel %vm437, %v450, 0
    %454 = vmatpush.bf16.msra.mxu0 0
    %455 = vmatpush.bf16.msra.mxu0 0
    %456 = vmatpush.bf16.msra.mxu0 0
    %457 = vmatpush.bf16.msra.mxu0 0
    %458 = vmatpush.bf16.msra.mxu0 %v395
    %459 = vmatpush.bf16.msra.mxu0 %v391
    %460 = vmatpush.bf16.msra.mxu0 %v387
    %461 = vmatpush.bf16.msra.mxu0 %v383
    %462 = vmatmul.bf16.gmra.mxu0 %v452
    %v463 = vpop.f32.mrf.mxu0
    %v464 = vadd.f32 0.0, %v463
    %v465 = vpop.f32.mrf.mxu0
    %v466 = vadd.f32 0.0, %v465
    %467 = vdwg.mxu0
    %v468 = vmax.f32 %v464, 1e-30
    %v469 = vmax.f32 %v466, 1e-30
    %v470 = vrcp.pop %v468
    %v471 = vrcp.pop %v469
    %474 = vrot.lane.b32.xlu0 %v470, 96
    %v475 = vpop.permute.xlu0 %474
    %476 = vrot.lane.b32.xlu0 %v471, 96
    %v477 = vpop.permute.xlu0 %476
    %v480 = vmul.f32 %v464, %v475
    %v481 = vmul.f32 %v466, %v477
    %v482 = vld [vmem:[%s12] sm:$0xf]
    %v483 = vld [vmem:[%s12 + $0x4] sm:$0xf]
    %v484 = vld [vmem:[%s12 + $0x8] sm:$0xf]
    %v485 = vld [vmem:[%s12 + $0xc] sm:$0xf]
    %v486 = vld [vmem:[#allocation16] sm:$0x1]
    %v487 = vpack.c.bf16 %v481, %v480
    %v488 = vperm.slane %v486, 0
    %v493 = vunpack.c.l.b16 %v482
    %v494 = vunpack.c.l.b16 %v483
    %v495 = vunpack.c.l.b16 %v484
    %v496 = vunpack.c.l.b16 %v485
    %v497 = vpack.c.b16 %v494, %v493
    %v498 = vpack.c.b16 %v496, %v495
    %v502 = vsel %vm241, %v487, 0
    %504 = vmatpush.bf16.msra.mxu0 0
    %505 = vmatpush.bf16.msra.mxu0 0
    %506 = vmatpush.bf16.msra.mxu0 0
    %507 = vmatpush.bf16.msra.mxu0 0
    %508 = vmatpush.bf16.msra.mxu0 0
    %509 = vmatpush.bf16.msra.mxu0 0
    %510 = vmatpush.bf16.msra.mxu0 %v498
    %511 = vmatpush.bf16.msra.mxu0 %v497
    %512 = vmatmul.bf16.gmra.mxu0 %v502
    %v513 = vpop.f32.mrf.mxu0
    %v514 = vadd.f32 %v488, %v513
    %v515 = vpop.f32.mrf.mxu0
    %v516 = vadd.f32 %v488, %v515
    %517 = vdwg.mxu0
    %v518 = vadd.f32 %v216, %v514
    %v519 = vadd.f32 %v217, %v516
    %v520 = vld [vmem:[%s14] sm:$0x1]
    %v521 = vld [vmem:[%s14 + $0x1] sm:$0x1]
    %v522 = vsel %vm241, %v518, 0.0
    %523 = vadd.xlane.f32.xlu0 %v522
    %v524 = vpop.xlane.xlu0 %523
    %v525 = vsel %vm241, %v519, 0.0
    %526 = vadd.xlane.f32.xlu0 %v525
    %v527 = vpop.xlane.xlu0 %526
    %v528 = vrcp.pop 32.0
    %v529 = vmul.f32 32.0, %v528
    %v530 = vsub.f32 1.0, %v529
    %v531 = vmul.f32 %v528, %v530
    %v532 = vadd.f32 %v528, %v531
    %vm533 = vweird.f32 %v528
    %v534 = vsel %vm533, %v528, %v532
    %v535 = vmul.f32 %v524, %v534
    %v536 = vmul.f32 %v527, %v534
    %v537 = vsub.f32 %v518, %v535
    %v538 = vsub.f32 %v519, %v536
    %v539 = vmul.f32 %v537, %v537
    %v540 = vmul.f32 %v538, %v538
    %v541 = vsel %vm241, %v539, 0.0
    %542 = vadd.xlane.f32.xlu0 %v541
    %v543 = vpop.xlane.xlu0 %542
    %v544 = vsel %vm241, %v540, 0.0
    %545 = vadd.xlane.f32.xlu0 %v544
    %v546 = vpop.xlane.xlu0 %545
    %v547 = vmul.f32 %v543, %v534
    %v548 = vmul.f32 %v546, %v534
    %v549 = vadd.f32 %v547, 1e-05
    %v550 = vadd.f32 %v548, 1e-05
    %v551 = vrsqrt.pop %v549
    %v552 = vmul.f32 %v551, %v549
    %v553 = vmul.f32 %v552, %v551
    %v554 = vmul.f32 0.5, %v553
    %v555 = vsub.f32 1.5, %v554
    %v556 = vmul.f32 %v551, %v555
    %vm557 = vweird.f32 %v549
    %vm558 = vweird.f32 %v551
    %vm559 = vmor %vm557, %vm558
    %v560 = vsel %vm559, %v551, %v556
    %v561 = vrsqrt.pop %v550
    %v562 = vmul.f32 %v561, %v550
    %v563 = vmul.f32 %v562, %v561
    %v564 = vmul.f32 0.5, %v563
    %v565 = vsub.f32 1.5, %v564
    %v566 = vmul.f32 %v561, %v565
    %vm567 = vweird.f32 %v550
    %vm568 = vweird.f32 %v561
    %vm569 = vmor %vm567, %vm568
    %v570 = vsel %vm569, %v561, %v566
    %v571 = vmul.f32 %v537, %v560
    %v572 = vmul.f32 %v538, %v570
    %v573 = vperm.slane %v520, 0
    %v574 = vmul.f32 %v571, %v573
    %v575 = vmul.f32 %v572, %v573
    %v576 = vperm.slane %v521, 0
    %v577 = vadd.f32 %v574, %v576
    %v578 = vadd.f32 %v575, %v576
    %v579 = vpack.c.bf16 %v578, %v577
    %s580 = scalar_lea.vmem %s12, 16
    %v581 = vld [vmem:[%s580] sm:$0xf]
    %v582 = vld [vmem:[%s580 + $0x4] sm:$0xf]
    %v583 = vld [vmem:[%s580 + $0x8] sm:$0xf]
    %v584 = vld [vmem:[%s580 + $0xc] sm:$0xf]
    %v585 = vld [vmem:[#allocation16 + $0x1] sm:$0x1]
    %v586 = vperm.slane %v585, 0
    %v591 = vunpack.c.l.b16 %v581
    %v592 = vunpack.c.l.b16 %v582
    %v593 = vunpack.c.l.b16 %v583
    %v594 = vunpack.c.l.b16 %v584
    %v595 = vpack.c.b16 %v592, %v591
    %v596 = vpack.c.b16 %v594, %v593
    %v600 = vsel %vm241, %v579, 0
    %602 = vmatpush.bf16.msra.mxu0 0
    %603 = vmatpush.bf16.msra.mxu0 0
    %604 = vmatpush.bf16.msra.mxu0 0
    %605 = vmatpush.bf16.msra.mxu0 0
    %606 = vmatpush.bf16.msra.mxu0 0
    %607 = vmatpush.bf16.msra.mxu0 0
    %608 = vmatpush.bf16.msra.mxu0 %v596
    %609 = vmatpush.bf16.msra.mxu0 %v595
    %610 = vmatmul.bf16.gmra.mxu0 %v600
    %v611 = vpop.f32.mrf.mxu0
    %v612 = vadd.f32 %v586, %v611
    %v613 = vpop.f32.mrf.mxu0
    %v614 = vadd.f32 %v586, %v613
    %615 = vdwg.mxu0
    %v616 = vpack.c.bf16 %v219, %v218
    %v617 = vld [vmem:[#allocation13] sm:$0xf]
    %v618 = vld [vmem:[#allocation13 + $0x4] sm:$0xf]
    %v619 = vld [vmem:[#allocation13 + $0x8] sm:$0xf]
    %v620 = vld [vmem:[#allocation13 + $0xc] sm:$0xf]
    %v621 = vld [vmem:[#allocation14] sm:$0x1]
    %v623 = vperm.slane %v621, 0
    %v629 = vunpack.c.l.b16 %v617
    %v630 = vunpack.c.l.b16 %v618
    %v631 = vunpack.c.l.b16 %v619
    %v632 = vunpack.c.l.b16 %v620
    %v633 = vpack.c.b16 %v630, %v629
    %v634 = vpack.c.b16 %v632, %v631
    %v638 = vsel %vm241, %v616, 0
    %640 = vmatpush.bf16.msra.mxu0 0
    %641 = vmatpush.bf16.msra.mxu0 0
    %642 = vmatpush.bf16.msra.mxu0 0
    %643 = vmatpush.bf16.msra.mxu0 0
    %644 = vmatpush.bf16.msra.mxu0 0
    %645 = vmatpush.bf16.msra.mxu0 0
    %646 = vmatpush.bf16.msra.mxu0 %v634
    %647 = vmatpush.bf16.msra.mxu0 %v633
    %648 = vmatmul.bf16.gmra.mxu0 %v638
    %v649 = vpop.f32.mrf.mxu0
    %v650 = vadd.f32 %v623, %v649
    %v651 = vpop.f32.mrf.mxu0
    %v652 = vadd.f32 %v623, %v651
    %653 = vdwg.mxu0
    %v654 = vld [vmem:[#allocation8] sm:$0xff]
    %v655 = vld [vmem:[#allocation8 + $0x8] sm:$0xff]
    %v656 = vld [vmem:[#allocation10] sm:$0xff]
    %v657 = vld [vmem:[#allocation10 + $0x8] sm:$0xff]
    %v658 = vld [vmem:[#allocation10 + $0x10] sm:$0xff]
    %v659 = vld [vmem:[#allocation10 + $0x18] sm:$0xff]
    %v660 = vld [vmem:[#allocation10 + $0x20] sm:$0xff]
    %v661 = vld [vmem:[#allocation10 + $0x28] sm:$0xff]
    %v662 = vld [vmem:[#allocation10 + $0x30] sm:$0xff]
    %v663 = vld [vmem:[#allocation10 + $0x38] sm:$0xff]
    %v664 = vld [vmem:[%s7] sm:$0xf]
    %v665 = vld [vmem:[%s7 + $0x4] sm:$0xf]
    %v666 = vld [vmem:[%s7 + $0x8] sm:$0xf]
    %v667 = vld [vmem:[%s7 + $0xc] sm:$0xf]
    %v668 = vld [vmem:[%s7 + $0x10] sm:$0xf]
    %v669 = vld [vmem:[%s7 + $0x14] sm:$0xf]
    %v670 = vld [vmem:[%s7 + $0x18] sm:$0xf]
    %v671 = vld [vmem:[%s7 + $0x1c] sm:$0xf]
    %v672 = vmul.f32 %v650, %v656
    %v673 = vmul.f32 %v652, %v657
    %v674 = vmul.f32 %v650, %v658
    %v675 = vmul.f32 %v652, %v659
    %v676 = vmul.f32 %v650, %v660
    %v677 = vmul.f32 %v652, %v661
    %v678 = vmul.f32 %v650, %v662
    %v679 = vmul.f32 %v652, %v663
    %v680 = vpack.c.bf16 %v672, %v672
    %v681 = vpack.c.bf16 %v673, %v673
    %v682 = vpack.c.bf16 %v674, %v674
    %v683 = vpack.c.bf16 %v675, %v675
    %v684 = vpack.c.bf16 %v676, %v676
    %v685 = vpack.c.bf16 %v677, %v677
    %v686 = vpack.c.bf16 %v678, %v678
    %v687 = vpack.c.bf16 %v679, %v679
    %v696 = vunpack.c.l.b16 %v680
    %v697 = vunpack.c.l.b16 %v681
    %v698 = vunpack.c.l.b16 %v682
    %v699 = vunpack.c.l.b16 %v683
    %v700 = vunpack.c.l.b16 %v684
    %v701 = vunpack.c.l.b16 %v685
    %v702 = vunpack.c.l.b16 %v686
    %v703 = vunpack.c.l.b16 %v687
    %v704 = vpack.c.b16 %v697, %v696
    %v705 = vpack.c.b16 %v699, %v698
    %v706 = vpack.c.b16 %v701, %v700
    %v707 = vpack.c.b16 %v703, %v702
    %708 = vrot.lane.b32.xlu0 %v704, 96
    %v709 = vpop.permute.xlu0 %708
    %710 = vrot.lane.b32.xlu0 %v705, 96
    %v711 = vpop.permute.xlu0 %710
    %712 = vrot.lane.b32.xlu0 %v706, 96
    %v713 = vpop.permute.xlu0 %712
    %714 = vrot.lane.b32.xlu0 %v707, 96
    %v715 = vpop.permute.xlu0 %714
    %v724 = vunpack.c.l.b16 %v664
    %v725 = vunpack.c.l.b16 %v665
    %v726 = vunpack.c.l.b16 %v666
    %v727 = vunpack.c.l.b16 %v667
    %v728 = vunpack.c.l.b16 %v668
    %v729 = vunpack.c.l.b16 %v669
    %v730 = vunpack.c.l.b16 %v670
    %v731 = vunpack.c.l.b16 %v671
    %v732 = vpack.c.b16 %v725, %v724
    %v733 = vpack.c.b16 %v727, %v726
    %v734 = vpack.c.b16 %v729, %v728
    %v735 = vpack.c.b16 %v731, %v730
    %736 = vrot.lane.b32.xlu0 %v732, 32
    %v737 = vpop.permute.xlu0 %736
    %738 = vrot.lane.b32.xlu0 %v733, 32
    %v739 = vpop.permute.xlu0 %738
    %740 = vrot.lane.b32.xlu0 %v734, 32
    %v741 = vpop.permute.xlu0 %740
    %742 = vrot.lane.b32.xlu0 %v735, 32
    %v743 = vpop.permute.xlu0 %742
    %v746 = vsel %vm241, %v709, %v737
    %v750 = vsel %vm241, %v711, %v739
    %v754 = vsel %vm241, %v713, %v741
    %v758 = vsel %vm241, %v715, %v743
    %v760 = vmul.f32 %v612, 0.35355338
    %v761 = vmul.f32 %v614, 0.35355338
    %v762 = vpack.c.bf16 %v761, %v760
    %v764 = vsel %vm241, %v762, 0
    %v767 = vsel %vm241, %v704, 0
    %v770 = vsel %vm241, %v705, 0
    %v773 = vsel %vm241, %v706, 0
    %v776 = vsel %vm241, %v707, 0
    %778 = vmatpush.bf16.xpose.msra.mxu0 0
    %779 = vmatpush.bf16.xpose.msra.mxu0 0
    %780 = vmatpush.bf16.xpose.msra.mxu0 0
    %781 = vmatpush.bf16.xpose.msra.mxu0 0
    %782 = vmatpush.bf16.xpose.msra.mxu0 %v776
    %783 = vmatpush.bf16.xpose.msra.mxu0 %v773
    %784 = vmatpush.bf16.xpose.msra.mxu0 %v770
    %785 = vmatpush.bf16.xpose.msra.mxu0 %v767
    %786 = vmatmul.bf16.gmra.mxu0 %v764
    %v787 = vpop.f32.mrf.mxu0
    %v788 = vadd.f32 %v654, %v787
    %v789 = vpop.f32.mrf.mxu0
    %v790 = vadd.f32 %v655, %v789
    %791 = vdwg.mxu0
    %v792 = vsel %vm437, %v788, -inf
    %793 = vmax.xlane.f32.xlu0 %v792
    %v794 = vpop.xlane.xlu0 %793
    %v795 = vsel %vm437, %v790, -inf
    %796 = vmax.xlane.f32.xlu0 %v795
    %v797 = vpop.xlane.xlu0 %796
    %v798 = vsub.f32 %v788, %v794
    %v799 = vsub.f32 %v790, %v797
    %v800 = vmul.f32 %v798, 1.442695
    %v801 = vpow.pop %v800
    %v802 = vmul.f32 %v799, 1.442695
    %v803 = vpow.pop %v802
    %v804 = vpack.c.bf16 %v803, %v801
    %v806 = vsel %vm437, %v804, 0
    %808 = vmatpush.bf16.msra.mxu0 0
    %809 = vmatpush.bf16.msra.mxu0 0
    %810 = vmatpush.bf16.msra.mxu0 0
    %811 = vmatpush.bf16.msra.mxu0 0
    %812 = vmatpush.bf16.msra.mxu0 %v758
    %813 = vmatpush.bf16.msra.mxu0 %v754
    %814 = vmatpush.bf16.msra.mxu0 %v750
    %815 = vmatpush.bf16.msra.mxu0 %v746
    %816 = vmatmul.bf16.gmra.mxu0 %v806
    %v817 = vpop.f32.mrf.mxu0
    %v818 = vadd.f32 0.0, %v817
    %v819 = vpop.f32.mrf.mxu0
    %v820 = vadd.f32 0.0, %v819
    %821 = vdwg.mxu0
    %v822 = vmax.f32 %v818, 1e-30
    %v823 = vmax.f32 %v820, 1e-30
    %v824 = vrcp.pop %v822
    %v825 = vrcp.pop %v823
    %828 = vrot.lane.b32.xlu0 %v824, 96
    %v829 = vpop.permute.xlu0 %828
    %830 = vrot.lane.b32.xlu0 %v825, 96
    %v831 = vpop.permute.xlu0 %830
    %v834 = vmul.f32 %v818, %v829
    %v835 = vmul.f32 %v820, %v831
    %s836 = scalar_lea.vmem %s12, 32
    %v837 = vld [vmem:[%s836] sm:$0xf]
    %v838 = vld [vmem:[%s836 + $0x4] sm:$0xf]
    %v839 = vld [vmem:[%s836 + $0x8] sm:$0xf]
    %v840 = vld [vmem:[%s836 + $0xc] sm:$0xf]
    %v841 = vld [vmem:[#allocation16 + $0x2] sm:$0x1]
    %v842 = vpack.c.bf16 %v835, %v834
    %v843 = vperm.slane %v841, 0
    %v848 = vunpack.c.l.b16 %v837
    %v849 = vunpack.c.l.b16 %v838
    %v850 = vunpack.c.l.b16 %v839
    %v851 = vunpack.c.l.b16 %v840
    %v852 = vpack.c.b16 %v849, %v848
    %v853 = vpack.c.b16 %v851, %v850
    %v857 = vsel %vm241, %v842, 0
    %859 = vmatpush.bf16.msra.mxu0 0
    %860 = vmatpush.bf16.msra.mxu0 0
    %861 = vmatpush.bf16.msra.mxu0 0
    %862 = vmatpush.bf16.msra.mxu0 0
    %863 = vmatpush.bf16.msra.mxu0 0
    %864 = vmatpush.bf16.msra.mxu0 0
    %865 = vmatpush.bf16.msra.mxu0 %v853
    %866 = vmatpush.bf16.msra.mxu0 %v852
    %867 = vmatmul.bf16.gmra.mxu0 %v857
    %v868 = vpop.f32.mrf.mxu0
    %v869 = vadd.f32 %v843, %v868
    %v870 = vpop.f32.mrf.mxu0
    %v871 = vadd.f32 %v843, %v870
    %872 = vdwg.mxu0
    %v873 = vadd.f32 %v577, %v869
    %v874 = vadd.f32 %v578, %v871
    %v875 = vld [vmem:[%s14 + $0x2] sm:$0x1]
    %v876 = vld [vmem:[%s14 + $0x3] sm:$0x1]
    %v877 = vsel %vm241, %v873, 0.0
    %878 = vadd.xlane.f32.xlu0 %v877
    %v879 = vpop.xlane.xlu0 %878
    %v880 = vsel %vm241, %v874, 0.0
    %881 = vadd.xlane.f32.xlu0 %v880
    %v882 = vpop.xlane.xlu0 %881
    %v883 = vmul.f32 %v879, %v534
    %v884 = vmul.f32 %v882, %v534
    %v885 = vsub.f32 %v873, %v883
    %v886 = vsub.f32 %v874, %v884
    %v887 = vmul.f32 %v885, %v885
    %v888 = vmul.f32 %v886, %v886
    %v889 = vsel %vm241, %v887, 0.0
    %890 = vadd.xlane.f32.xlu0 %v889
    %v891 = vpop.xlane.xlu0 %890
    %v892 = vsel %vm241, %v888, 0.0
    %893 = vadd.xlane.f32.xlu0 %v892
    %v894 = vpop.xlane.xlu0 %893
    %v895 = vmul.f32 %v891, %v534
    %v896 = vmul.f32 %v894, %v534
    %v897 = vadd.f32 %v895, 1e-05
    %v898 = vadd.f32 %v896, 1e-05
    %v899 = vrsqrt.pop %v897
    %v900 = vmul.f32 %v899, %v897
    %v901 = vmul.f32 %v900, %v899
    %v902 = vmul.f32 0.5, %v901
    %v903 = vsub.f32 1.5, %v902
    %v904 = vmul.f32 %v899, %v903
    %vm905 = vweird.f32 %v897
    %vm906 = vweird.f32 %v899
    %vm907 = vmor %vm905, %vm906
    %v908 = vsel %vm907, %v899, %v904
    %v909 = vrsqrt.pop %v898
    %v910 = vmul.f32 %v909, %v898
    %v911 = vmul.f32 %v910, %v909
    %v912 = vmul.f32 0.5, %v911
    %v913 = vsub.f32 1.5, %v912
    %v914 = vmul.f32 %v909, %v913
    %vm915 = vweird.f32 %v898
    %vm916 = vweird.f32 %v909
    %vm917 = vmor %vm915, %vm916
    %v918 = vsel %vm917, %v909, %v914
    %v919 = vmul.f32 %v885, %v908
    %v920 = vmul.f32 %v886, %v918
    %v921 = vperm.slane %v875, 0
    %v922 = vmul.f32 %v919, %v921
    %v923 = vmul.f32 %v920, %v921
    %v924 = vperm.slane %v876, 0
    %v925 = vadd.f32 %v922, %v924
    %v926 = vadd.f32 %v923, %v924
    %v927 = vpack.c.bf16 %v926, %v925
    %v928 = vld [vmem:[#allocation17] sm:$0xf]
    %v929 = vld [vmem:[#allocation17 + $0x4] sm:$0xf]
    %v930 = vld [vmem:[#allocation17 + $0x8] sm:$0xf]
    %v931 = vld [vmem:[#allocation17 + $0xc] sm:$0xf]
    %v932 = vld [vmem:[%s16] sm:$0x1]
    %v934 = vperm.slane %v932, 0
    %v940 = vunpack.c.l.b16 %v928
    %v941 = vunpack.c.l.b16 %v929
    %v942 = vunpack.c.l.b16 %v930
    %v943 = vunpack.c.l.b16 %v931
    %v944 = vpack.c.b16 %v941, %v940
    %v945 = vpack.c.b16 %v943, %v942
    %v949 = vsel %vm241, %v927, 0
    %951 = vmatpush.bf16.msra.mxu0 0
    %952 = vmatpush.bf16.msra.mxu0 0
    %953 = vmatpush.bf16.msra.mxu0 0
    %954 = vmatpush.bf16.msra.mxu0 0
    %955 = vmatpush.bf16.msra.mxu0 0
    %956 = vmatpush.bf16.msra.mxu0 0
    %957 = vmatpush.bf16.msra.mxu0 %v945
    %958 = vmatpush.bf16.msra.mxu0 %v944
    %959 = vmatmul.bf16.gmra.mxu0 %v949
    %v960 = vpop.f32.mrf.mxu0
    %v961 = vadd.f32 %v934, %v960
    %v962 = vpop.f32.mrf.mxu0
    %v963 = vadd.f32 %v934, %v962
    %964 = vdwg.mxu0
    %v965 = vmax.f32 %v961, 0.0
    %v966 = vmax.f32 %v963, 0.0
    %v967 = vpack.c.bf16 %v966, %v965
    %v968 = vld [vmem:[%s17] sm:$0xf]
    %v969 = vld [vmem:[%s17 + $0x4] sm:$0xf]
    %v970 = vld [vmem:[%s17 + $0x8] sm:$0xf]
    %v971 = vld [vmem:[%s17 + $0xc] sm:$0xf]
    %v972 = vld [vmem:[%s17 + $0x10] sm:$0xf]
    %v973 = vld [vmem:[%s17 + $0x14] sm:$0xf]
    %v974 = vld [vmem:[%s17 + $0x18] sm:$0xf]
    %v975 = vld [vmem:[%s17 + $0x1c] sm:$0xf]
    %v976 = vld [vmem:[%s18] sm:$0x1]
    %v978 = vperm.slane %v976, 0
    %v988 = vunpack.c.l.b16 %v968
    %v989 = vunpack.c.l.b16 %v969
    %v990 = vunpack.c.l.b16 %v970
    %v991 = vunpack.c.l.b16 %v971
    %v992 = vunpack.c.l.b16 %v972
    %v993 = vunpack.c.l.b16 %v973
    %v994 = vunpack.c.l.b16 %v974
    %v995 = vunpack.c.l.b16 %v975
    %v996 = vpack.c.b16 %v989, %v988
    %v997 = vpack.c.b16 %v991, %v990
    %v998 = vpack.c.b16 %v993, %v992
    %v999 = vpack.c.b16 %v995, %v994
    %v1005 = vsel %vm437, %v967, 0
    %1007 = vmatpush.bf16.msra.mxu0 0
    %1008 = vmatpush.bf16.msra.mxu0 0
    %1009 = vmatpush.bf16.msra.mxu0 0
    %1010 = vmatpush.bf16.msra.mxu0 0
    %1011 = vmatpush.bf16.msra.mxu0 %v999
    %1012 = vmatpush.bf16.msra.mxu0 %v998
    %1013 = vmatpush.bf16.msra.mxu0 %v997
    %1014 = vmatpush.bf16.msra.mxu0 %v996
    %1015 = vmatmul.bf16.gmra.mxu0 %v1005
    %v1016 = vpop.f32.mrf.mxu0
    %v1017 = vadd.f32 %v978, %v1016
    %v1018 = vpop.f32.mrf.mxu0
    %v1019 = vadd.f32 %v978, %v1018
    %1020 = vdwg.mxu0
    %v1021 = vadd.f32 %v925, %v1017
    %v1022 = vadd.f32 %v926, %v1019
    %v1023 = vld [vmem:[%s14 + $0x4] sm:$0x1]
    %v1024 = vld [vmem:[%s14 + $0x5] sm:$0x1]
    %v1025 = vsel %vm241, %v1021, 0.0
    %1026 = vadd.xlane.f32.xlu0 %v1025
    %v1027 = vpop.xlane.xlu0 %1026
    %v1028 = vsel %vm241, %v1022, 0.0
    %1029 = vadd.xlane.f32.xlu0 %v1028
    %v1030 = vpop.xlane.xlu0 %1029
    %v1031 = vmul.f32 %v1027, %v534
    %v1032 = vmul.f32 %v1030, %v534
    %v1033 = vsub.f32 %v1021, %v1031
    %v1034 = vsub.f32 %v1022, %v1032
    %v1035 = vmul.f32 %v1033, %v1033
    %v1036 = vmul.f32 %v1034, %v1034
    %v1037 = vsel %vm241, %v1035, 0.0
    %1038 = vadd.xlane.f32.xlu0 %v1037
    %v1039 = vpop.xlane.xlu0 %1038
    %v1040 = vsel %vm241, %v1036, 0.0
    %1041 = vadd.xlane.f32.xlu0 %v1040
    %v1042 = vpop.xlane.xlu0 %1041
    %v1043 = vmul.f32 %v1039, %v534
    %v1044 = vmul.f32 %v1042, %v534
    %v1045 = vadd.f32 %v1043, 1e-05
    %v1046 = vadd.f32 %v1044, 1e-05
    %v1047 = vrsqrt.pop %v1045
    %v1048 = vmul.f32 %v1047, %v1045
    %v1049 = vmul.f32 %v1048, %v1047
    %v1050 = vmul.f32 0.5, %v1049
    %v1051 = vsub.f32 1.5, %v1050
    %v1052 = vmul.f32 %v1047, %v1051
    %vm1053 = vweird.f32 %v1045
    %vm1054 = vweird.f32 %v1047
    %vm1055 = vmor %vm1053, %vm1054
    %v1056 = vsel %vm1055, %v1047, %v1052
    %v1057 = vrsqrt.pop %v1046
    %v1058 = vmul.f32 %v1057, %v1046
    %v1059 = vmul.f32 %v1058, %v1057
    %v1060 = vmul.f32 0.5, %v1059
    %v1061 = vsub.f32 1.5, %v1060
    %v1062 = vmul.f32 %v1057, %v1061
    %vm1063 = vweird.f32 %v1046
    %vm1064 = vweird.f32 %v1057
    %vm1065 = vmor %vm1063, %vm1064
    %v1066 = vsel %vm1065, %v1057, %v1062
    %v1067 = vmul.f32 %v1033, %v1056
    %v1068 = vmul.f32 %v1034, %v1066
    %v1069 = vperm.slane %v1023, 0
    %v1070 = vmul.f32 %v1067, %v1069
    %v1071 = vmul.f32 %v1068, %v1069
    %v1072 = vperm.slane %v1024, 0
    %v1073 = vadd.f32 %v1070, %v1072
    %v1074 = vadd.f32 %v1071, %v1072
    %1075 = vst.msk [vmem:[#allocation19] sm:$0xff] %vm241, %v1073
    %1076 = vst.msk [vmem:[#allocation19 + $0x8] sm:$0xff] %vm241, %v1074
    // Predicated region
    $region118: #{tpu_custom_call.1} parent=1 // pred_check
      _
    $region119: #{tpu_custom_call.1} parent=1 // pred_check_branch
      %1078 = sbr.rel (0) target = $region121
    $region120: #{tpu_custom_call.1} parent=1 // pred_region
      %1080 = vsyncadd [#allocation4], 0
      %s1081 = sshll.u32 [#allocation19], 4
      %s1082 = int_to_ptr.vmem [resolvable:$true] %s1081
      %s1083 = sshll.u32 %s19, 4
      %s1084 = int_to_ptr.hbm [resolvable:$true] %s1083
      %1089 = dma.vmem_to_hbm [thread:$0]  %s1082, 256, %s1084, [#allocation4], 128, 128, 8
    $region121: #{tpu_custom_call.1} parent=1 // pred_fallthru
      _
    // Predicated region
    $region122: #{tpu_custom_call.1} parent=1 // pred_check
      _
    $region123: #{tpu_custom_call.1} parent=1 // pred_check_branch
      %1091 = sbr.rel (0) target = $region125
    $region124: #{tpu_custom_call.1} parent=1 // pred_region
      %1093 = dma.done [#allocation4], 256
    $region125: #{tpu_custom_call.1} parent=1 // pred_fallthru
      _
    %1094 = vsyncpa [#allocation3], 1
    %1095 = vsyncpa [#allocation6], 1
    %1096 = vsyncpa [#allocation9], 1
    %1097 = vsyncpa [#allocation12], 1
    %1098 = vsyncpa [#allocation15], 1
    %1099 = vsyncpa [#allocation18], 1
    %1100 = vsyncpa [#allocation4], 1

</llo_original>
